<compile_context>
chip_gen: v7x
topology: tpu7x:2x2x1
jax: 0.10.0
libtpu: 0.0.40
codegen_flags: <defaults>
</compile_context>

<pallas_src>
import jax
import jax.numpy as jnp
from jax.experimental import pallas as pl
from jax.experimental.pallas import tpu as pltpu


def lsnet_kernel(xa_ref, xb_ref, w0p_ref, w1p_ref, bp_ref,
                 whh_t_ref, wlin_t_ref, blin_ref,
                 out_ref,
                 gates_ref, h_ref, c_ref):
    Bp, hidR = h_ref.shape
    rows = gates_ref.shape[0]          # (T-1) * Bp
    Tm1 = rows // Bp
    H3 = 3 * hidR

    # Fused Conv1d + LSTM input projection for ALL timesteps: one lane-dense
    # ((T-1)*Bp, 81) @ (81, 4H) pair of MXU matmuls, bias folded in once.
    gates_ref[...] = (
        jnp.dot(xa_ref[...], w0p_ref[...], preferred_element_type=jnp.float32)
        + jnp.dot(xb_ref[...], w1p_ref[...], preferred_element_type=jnp.float32)
        + bp_ref[...])                                   # ((T-1)*Bp, 4H)

    h_ref[...] = jnp.zeros_like(h_ref)
    c_ref[...] = jnp.zeros_like(c_ref)

    whh_t = whh_t_ref[...]                               # hoisted, (hidR, 4H)

    def step(t, carry):
        row = pl.multiple_of(t * Bp, Bp)                 # sublane-aligned (Bp = 8)
        g_in = gates_ref[pl.ds(row, Bp), :]              # (Bp, 4H) timestep t
        h = h_ref[...]
        c = c_ref[...]
        # Only the recurrent matmul remains on the serial critical path.
        gates = g_in + jnp.dot(h, whh_t, preferred_element_type=jnp.float32)
        sig = jax.nn.sigmoid(gates[:, :H3])              # i, f, o contiguous
        i_g = sig[:, 0:hidR]
        f_g = sig[:, hidR:2 * hidR]
        o_g = sig[:, 2 * hidR:H3]
        g_g = jnp.tanh(gates[:, H3:])
        c_new = f_g * c + i_g * g_g
        h_new = o_g * jnp.tanh(c_new)
        c_ref[...] = c_new
        h_ref[...] = h_new
        return carry

    jax.lax.fori_loop(0, Tm1, step, 0, unroll=True)

    # Linear(hidR -> out_size) on the final hidden state.
    out_ref[...] = (jnp.dot(h_ref[...], wlin_t_ref[...],
                            preferred_element_type=jnp.float32)
                    + blin_ref[...])


def lsnet_forward(x, params):
    """x: (B, 81, T) float32 in PyTorch NCL layout."""
    B, Cin, T = x.shape
    hidC = params["w_conv"].shape[0]
    hidR = params["w_hh"].shape[1]
    H4 = 4 * hidR
    out_size = params["w_lin"].shape[0]

    # Pad batch to a sublane multiple (zeros in padded rows are harmless: their
    # hidden states are discarded after the kernel).
    Bp = ((B + 7) // 8) * 8

    # Layout glue (plain JAX): time-major, pad batch, flatten the two conv taps.
    x_tbc = jnp.transpose(x, (2, 0, 1))                  # (T, B, 81)
    if Bp != B:
        x_tbc = jnp.pad(x_tbc, ((0, 0), (0, Bp - B), (0, 0)))
    xa = x_tbc[:-1].reshape((T - 1) * Bp, Cin)           # tap at t
    xb = x_tbc[1:].reshape((T - 1) * Bp, Cin)            # tap at t+1

    # Gate re-order (PyTorch i,f,g,o -> i,f,o,g) so sigmoid/tanh act on two
    # contiguous lane ranges inside the kernel.
    perm = jnp.concatenate([jnp.arange(0, hidR),
                            jnp.arange(hidR, 2 * hidR),
                            jnp.arange(3 * hidR, 4 * hidR),
                            jnp.arange(2 * hidR, 3 * hidR)])
    w_ih = params["w_ih"][perm]                          # (4H, hidC)
    w_hh = params["w_hh"][perm]                          # (4H, hidR)
    b_lstm = (params["b_ih"] + params["b_hh"])[perm]     # (4H,)

    # Fuse Conv1d into the LSTM input projection (linear o linear, exact in f32).
    w0 = params["w_conv"][:, :, 0]                       # (hidC, 81)
    w1 = params["w_conv"][:, :, 1]
    w0p = w0.T @ w_ih.T                                  # (81, 4H)
    w1p = w1.T @ w_ih.T                                  # (81, 4H)
    bp = (params["b_conv"] @ w_ih.T + b_lstm).reshape(1, H4)

    whh_t = w_hh.T                                       # (hidR, 4H)
    wlin_t = params["w_lin"].T                           # (hidR, out_size)
    blin = params["b_lin"].reshape(1, out_size)

    cost = pl.CostEstimate(
        flops=(2 * 2 * (T - 1) * Bp * Cin * H4           # fused input projection
               + 2 * (T - 1) * Bp * hidR * H4            # recurrent matmuls
               + 2 * Bp * hidR * out_size),              # final linear
        transcendentals=5 * (T - 1) * Bp * hidR,
        bytes_accessed=4 * (2 * (T - 1) * Bp * Cin + 2 * Cin * H4
                            + hidR * H4 + hidR * out_size + Bp * out_size),
    )

    vmem = pl.BlockSpec(memory_space=pltpu.MemorySpace.VMEM)
    out_p = pl.pallas_call(
        lsnet_kernel,
        out_shape=jax.ShapeDtypeStruct((Bp, out_size), jnp.float32),
        in_specs=[vmem] * 8,
        out_specs=vmem,
        scratch_shapes=[
            pltpu.VMEM(((T - 1) * Bp, H4), jnp.float32),  # precomputed gate inputs
            pltpu.VMEM((Bp, hidR), jnp.float32),          # h
            pltpu.VMEM((Bp, hidR), jnp.float32),          # c
        ],
        compiler_params=pltpu.CompilerParams(
            vmem_limit_bytes=32 * 1024 * 1024),
        cost_estimate=cost,
    )(xa, xb, w0p, w1p, bp, whh_t, wlin_t, blin)
    return out_p[:B]


def lsnet_reference(x, params):
    """Pure-JAX reference mirroring the PyTorch forward exactly."""
    B, Cin, T = x.shape
    hidR = params["w_hh"].shape[1]
    w0 = params["w_conv"][:, :, 0]
    w1 = params["w_conv"][:, :, 1]
    h = jnp.zeros((B, hidR), jnp.float32)
    c = jnp.zeros((B, hidR), jnp.float32)
    for t in range(T - 1):
        conv_t = (x[:, :, t] @ w0.T + x[:, :, t + 1] @ w1.T
                  + params["b_conv"][None, :])
        gates = (conv_t @ params["w_ih"].T + h @ params["w_hh"].T
                 + params["b_ih"][None, :] + params["b_hh"][None, :])
        i = jax.nn.sigmoid(gates[:, 0 * hidR:1 * hidR])
        f = jax.nn.sigmoid(gates[:, 1 * hidR:2 * hidR])
        g = jnp.tanh(gates[:, 2 * hidR:3 * hidR])
        o = jax.nn.sigmoid(gates[:, 3 * hidR:4 * hidR])
        c = f * c + i * g
        h = o * jnp.tanh(c)
    return h @ params["w_lin"].T + params["b_lin"][None, :]


if __name__ == "__main__":
    # Small shapes consistent with the module: Conv1d in_channels is hard-coded
    # to 81; pick T=8, conv_size (hidC=hidR)=32, decoder_hidden_size=32, batch=2.
    B, Cin, T = 2, 81, 8
    hidC = hidR = 32
    out_size = 32

    key = jax.random.PRNGKey(0)
    ks = jax.random.split(key, 9)
    s = 0.1
    params = {
        "w_conv": jax.random.normal(ks[0], (hidC, Cin, 2), jnp.float32) * s,
        "b_conv": jax.random.normal(ks[1], (hidC,), jnp.float32) * s,
        "w_ih":   jax.random.normal(ks[2], (4 * hidR, hidC), jnp.float32) * s,
        "w_hh":   jax.random.normal(ks[3], (4 * hidR, hidR), jnp.float32) * s,
        "b_ih":   jax.random.normal(ks[4], (4 * hidR,), jnp.float32) * s,
        "b_hh":   jax.random.normal(ks[5], (4 * hidR,), jnp.float32) * s,
        "w_lin":  jax.random.normal(ks[6], (out_size, hidR), jnp.float32) * s,
        "b_lin":  jax.random.normal(ks[7], (out_size,), jnp.float32) * s,
    }
    x = jax.random.normal(ks[8], (B, Cin, T), jnp.float32)

    out = jax.block_until_ready(lsnet_forward(x, params))
    ref = jax.block_until_ready(lsnet_reference(x, params))

    assert out.shape == (B, out_size), out.shape
    assert jnp.allclose(out, ref, rtol=1e-3, atol=1e-3), (
        "max abs err", float(jnp.max(jnp.abs(out - ref))))
    print("KERNEL_OK")
</pallas_src>

<mosaic_0001>
module attributes {stable_mosaic.version = 11 : i64} {
  func.func @lsnet_kernel(%arg0: memref<56x81xf32, #tpu.memory_space<vmem>>, %arg1: memref<56x81xf32, #tpu.memory_space<vmem>>, %arg2: memref<81x128xf32, #tpu.memory_space<vmem>>, %arg3: memref<81x128xf32, #tpu.memory_space<vmem>>, %arg4: memref<1x128xf32, #tpu.memory_space<vmem>>, %arg5: memref<32x128xf32, #tpu.memory_space<vmem>>, %arg6: memref<32x32xf32, #tpu.memory_space<vmem>>, %arg7: memref<1x32xf32, #tpu.memory_space<vmem>>, %arg8: memref<8x32xf32, #tpu.memory_space<vmem>>, %arg9: memref<56x128xf32, #tpu.memory_space<vmem>>, %arg10: memref<8x32xf32, #tpu.memory_space<vmem>>, %arg11: memref<8x32xf32, #tpu.memory_space<vmem>>) attributes {dimension_semantics = [], scalar_prefetch = 0 : i64, scratch_operands = 3 : i64, tpu.core_type = #tpu.core_type<tc>} {
    %c0 = arith.constant 0 : index
    %c0_0 = arith.constant 0 : index
    %0 = vector.load %arg0[%c0, %c0_0] : memref<56x81xf32, #tpu.memory_space<vmem>>, vector<56x81xf32>
    %c0_1 = arith.constant 0 : index
    %c0_2 = arith.constant 0 : index
    %1 = vector.load %arg2[%c0_1, %c0_2] : memref<81x128xf32, #tpu.memory_space<vmem>>, vector<81x128xf32>
    %cst = arith.constant dense<0.000000e+00> : vector<56x128xf32>
    %2 = tpu.matmul %0, %1, %cst {dimension_numbers = #tpu.dot_dimension_numbers<[1], [0], [0], [1], [0, 0, 1, 1], [], []>} : vector<56x81xf32>, vector<81x128xf32>, vector<56x128xf32> -> vector<56x128xf32>
    %c0_3 = arith.constant 0 : index
    %c0_4 = arith.constant 0 : index
    %3 = vector.load %arg1[%c0_3, %c0_4] : memref<56x81xf32, #tpu.memory_space<vmem>>, vector<56x81xf32>
    %c0_5 = arith.constant 0 : index
    %c0_6 = arith.constant 0 : index
    %4 = vector.load %arg3[%c0_5, %c0_6] : memref<81x128xf32, #tpu.memory_space<vmem>>, vector<81x128xf32>
    %cst_7 = arith.constant dense<0.000000e+00> : vector<56x128xf32>
    %5 = tpu.matmul %3, %4, %cst_7 {dimension_numbers = #tpu.dot_dimension_numbers<[1], [0], [0], [1], [0, 0, 1, 1], [], []>} : vector<56x81xf32>, vector<81x128xf32>, vector<56x128xf32> -> vector<56x128xf32>
    %6 = arith.addf %2, %5 : vector<56x128xf32>
    %c0_8 = arith.constant 0 : index
    %c0_9 = arith.constant 0 : index
    %7 = vector.load %arg4[%c0_8, %c0_9] : memref<1x128xf32, #tpu.memory_space<vmem>>, vector<1x128xf32>
    %8 = vector.broadcast %7 : vector<1x128xf32> to vector<56x128xf32>
    %9 = arith.addf %6, %8 : vector<56x128xf32>
    %c0_10 = arith.constant 0 : index
    %c0_11 = arith.constant 0 : index
    %10 = vector.load %arg9[%c0_10, %c0_11] : memref<56x128xf32, #tpu.memory_space<vmem>>, vector<56x128xf32>
    tpu.vector_store %arg9[%c0_10, %c0_11], %9 {strides = array<i32>} : memref<56x128xf32, #tpu.memory_space<vmem>>, vector<56x128xf32>,
    %cst_12 = arith.constant 0.000000e+00 : f32
    %11 = vector.broadcast %cst_12 : f32 to vector<8x32xf32>
    %c0_13 = arith.constant 0 : index
    %c0_14 = arith.constant 0 : index
    %12 = vector.load %arg10[%c0_13, %c0_14] : memref<8x32xf32, #tpu.memory_space<vmem>>, vector<8x32xf32>
    tpu.vector_store %arg10[%c0_13, %c0_14], %11 {strides = array<i32>} : memref<8x32xf32, #tpu.memory_space<vmem>>, vector<8x32xf32>,
    %cst_15 = arith.constant 0.000000e+00 : f32
    %13 = vector.broadcast %cst_15 : f32 to vector<8x32xf32>
    %c0_16 = arith.constant 0 : index
    %c0_17 = arith.constant 0 : index
    %14 = vector.load %arg11[%c0_16, %c0_17] : memref<8x32xf32, #tpu.memory_space<vmem>>, vector<8x32xf32>
    tpu.vector_store %arg11[%c0_16, %c0_17], %13 {strides = array<i32>} : memref<8x32xf32, #tpu.memory_space<vmem>>, vector<8x32xf32>,
    %c0_18 = arith.constant 0 : index
    %c0_19 = arith.constant 0 : index
    %15 = vector.load %arg5[%c0_18, %c0_19] : memref<32x128xf32, #tpu.memory_space<vmem>>, vector<32x128xf32>
    %c0_i32 = arith.constant 0 : i32
    %c8_i32 = arith.constant 8 : i32
    %16 = arith.muli %c0_i32, %c8_i32 : i32
    %17 = tpu.assume_multiple %16, 8 : i32
    %18 = arith.index_cast %17 : i32 to index
    %c0_20 = arith.constant 0 : index
    %19 = vector.load %arg9[%18, %c0_20] : memref<56x128xf32, #tpu.memory_space<vmem>>, vector<8x128xf32>
    %c0_21 = arith.constant 0 : index
    %c0_22 = arith.constant 0 : index
    %20 = vector.load %arg10[%c0_21, %c0_22] : memref<8x32xf32, #tpu.memory_space<vmem>>, vector<8x32xf32>
    %c0_23 = arith.constant 0 : index
    %c0_24 = arith.constant 0 : index
    %21 = vector.load %arg11[%c0_23, %c0_24] : memref<8x32xf32, #tpu.memory_space<vmem>>, vector<8x32xf32>
    %cst_25 = arith.constant dense<0.000000e+00> : vector<8x128xf32>
    %22 = tpu.matmul %20, %15, %cst_25 {dimension_numbers = #tpu.dot_dimension_numbers<[1], [0], [0], [1], [0, 0, 1, 1], [], []>} : vector<8x32xf32>, vector<32x128xf32>, vector<8x128xf32> -> vector<8x128xf32>
    %23 = arith.addf %19, %22 : vector<8x128xf32>
    %24 = vector.extract_strided_slice %23 {offsets = [0, 0], sizes = [8, 96], strides = [1, 1]} : vector<8x128xf32> to vector<8x96xf32>
    %25 = arith.negf %24 : vector<8x96xf32>
    %26 = math.exp %25 : vector<8x96xf32>
    %cst_26 = arith.constant 1.000000e+00 : f32
    %27 = vector.broadcast %cst_26 : f32 to vector<8x96xf32>
    %28 = arith.addf %27, %26 : vector<8x96xf32>
    %29 = arith.divf %27, %28 : vector<8x96xf32>
    %30 = vector.extract_strided_slice %29 {offsets = [0, 0], sizes = [8, 32], strides = [1, 1]} : vector<8x96xf32> to vector<8x32xf32>
    %31 = vector.extract_strided_slice %29 {offsets = [0, 32], sizes = [8, 32], strides = [1, 1]} : vector<8x96xf32> to vector<8x32xf32>
    %32 = vector.extract_strided_slice %29 {offsets = [0, 64], sizes = [8, 32], strides = [1, 1]} : vector<8x96xf32> to vector<8x32xf32>
    %33 = vector.extract_strided_slice %23 {offsets = [0, 96], sizes = [8, 32], strides = [1, 1]} : vector<8x128xf32> to vector<8x32xf32>
    %34 = math.tanh %33 : vector<8x32xf32>
    %35 = arith.mulf %31, %21 : vector<8x32xf32>
    %36 = arith.mulf %30, %34 : vector<8x32xf32>
    %37 = arith.addf %35, %36 : vector<8x32xf32>
    %38 = math.tanh %37 : vector<8x32xf32>
    %39 = arith.mulf %32, %38 : vector<8x32xf32>
    %c0_27 = arith.constant 0 : index
    %c0_28 = arith.constant 0 : index
    %40 = vector.load %arg11[%c0_27, %c0_28] : memref<8x32xf32, #tpu.memory_space<vmem>>, vector<8x32xf32>
    tpu.vector_store %arg11[%c0_27, %c0_28], %37 {strides = array<i32>} : memref<8x32xf32, #tpu.memory_space<vmem>>, vector<8x32xf32>,
    %c0_29 = arith.constant 0 : index
    %c0_30 = arith.constant 0 : index
    %41 = vector.load %arg10[%c0_29, %c0_30] : memref<8x32xf32, #tpu.memory_space<vmem>>, vector<8x32xf32>
    tpu.vector_store %arg10[%c0_29, %c0_30], %39 {strides = array<i32>} : memref<8x32xf32, #tpu.memory_space<vmem>>, vector<8x32xf32>,
    %c1_i32 = arith.constant 1 : i32
    %c8_i32_31 = arith.constant 8 : i32
    %42 = arith.muli %c1_i32, %c8_i32_31 : i32
    %43 = tpu.assume_multiple %42, 8 : i32
    %44 = arith.index_cast %43 : i32 to index
    %c0_32 = arith.constant 0 : index
    %45 = vector.load %arg9[%44, %c0_32] : memref<56x128xf32, #tpu.memory_space<vmem>>, vector<8x128xf32>
    %c0_33 = arith.constant 0 : index
    %c0_34 = arith.constant 0 : index
    %46 = vector.load %arg10[%c0_33, %c0_34] : memref<8x32xf32, #tpu.memory_space<vmem>>, vector<8x32xf32>
    %c0_35 = arith.constant 0 : index
    %c0_36 = arith.constant 0 : index
    %47 = vector.load %arg11[%c0_35, %c0_36] : memref<8x32xf32, #tpu.memory_space<vmem>>, vector<8x32xf32>
    %cst_37 = arith.constant dense<0.000000e+00> : vector<8x128xf32>
    %48 = tpu.matmul %46, %15, %cst_37 {dimension_numbers = #tpu.dot_dimension_numbers<[1], [0], [0], [1], [0, 0, 1, 1], [], []>} : vector<8x32xf32>, vector<32x128xf32>, vector<8x128xf32> -> vector<8x128xf32>
    %49 = arith.addf %45, %48 : vector<8x128xf32>
    %50 = vector.extract_strided_slice %49 {offsets = [0, 0], sizes = [8, 96], strides = [1, 1]} : vector<8x128xf32> to vector<8x96xf32>
    %51 = arith.negf %50 : vector<8x96xf32>
    %52 = math.exp %51 : vector<8x96xf32>
    %cst_38 = arith.constant 1.000000e+00 : f32
    %53 = vector.broadcast %cst_38 : f32 to vector<8x96xf32>
    %54 = arith.addf %53, %52 : vector<8x96xf32>
    %55 = arith.divf %53, %54 : vector<8x96xf32>
    %56 = vector.extract_strided_slice %55 {offsets = [0, 0], sizes = [8, 32], strides = [1, 1]} : vector<8x96xf32> to vector<8x32xf32>
    %57 = vector.extract_strided_slice %55 {offsets = [0, 32], sizes = [8, 32], strides = [1, 1]} : vector<8x96xf32> to vector<8x32xf32>
    %58 = vector.extract_strided_slice %55 {offsets = [0, 64], sizes = [8, 32], strides = [1, 1]} : vector<8x96xf32> to vector<8x32xf32>
    %59 = vector.extract_strided_slice %49 {offsets = [0, 96], sizes = [8, 32], strides = [1, 1]} : vector<8x128xf32> to vector<8x32xf32>
    %60 = math.tanh %59 : vector<8x32xf32>
    %61 = arith.mulf %57, %47 : vector<8x32xf32>
    %62 = arith.mulf %56, %60 : vector<8x32xf32>
    %63 = arith.addf %61, %62 : vector<8x32xf32>
    %64 = math.tanh %63 : vector<8x32xf32>
    %65 = arith.mulf %58, %64 : vector<8x32xf32>
    %c0_39 = arith.constant 0 : index
    %c0_40 = arith.constant 0 : index
    %66 = vector.load %arg11[%c0_39, %c0_40] : memref<8x32xf32, #tpu.memory_space<vmem>>, vector<8x32xf32>
    tpu.vector_store %arg11[%c0_39, %c0_40], %63 {strides = array<i32>} : memref<8x32xf32, #tpu.memory_space<vmem>>, vector<8x32xf32>,
    %c0_41 = arith.constant 0 : index
    %c0_42 = arith.constant 0 : index
    %67 = vector.load %arg10[%c0_41, %c0_42] : memref<8x32xf32, #tpu.memory_space<vmem>>, vector<8x32xf32>
    tpu.vector_store %arg10[%c0_41, %c0_42], %65 {strides = array<i32>} : memref<8x32xf32, #tpu.memory_space<vmem>>, vector<8x32xf32>,
    %c2_i32 = arith.constant 2 : i32
    %c8_i32_43 = arith.constant 8 : i32
    %68 = arith.muli %c2_i32, %c8_i32_43 : i32
    %69 = tpu.assume_multiple %68, 8 : i32
    %70 = arith.index_cast %69 : i32 to index
    %c0_44 = arith.constant 0 : index
    %71 = vector.load %arg9[%70, %c0_44] : memref<56x128xf32, #tpu.memory_space<vmem>>, vector<8x128xf32>
    %c0_45 = arith.constant 0 : index
    %c0_46 = arith.constant 0 : index
    %72 = vector.load %arg10[%c0_45, %c0_46] : memref<8x32xf32, #tpu.memory_space<vmem>>, vector<8x32xf32>
    %c0_47 = arith.constant 0 : index
    %c0_48 = arith.constant 0 : index
    %73 = vector.load %arg11[%c0_47, %c0_48] : memref<8x32xf32, #tpu.memory_space<vmem>>, vector<8x32xf32>
    %cst_49 = arith.constant dense<0.000000e+00> : vector<8x128xf32>
    %74 = tpu.matmul %72, %15, %cst_49 {dimension_numbers = #tpu.dot_dimension_numbers<[1], [0], [0], [1], [0, 0, 1, 1], [], []>} : vector<8x32xf32>, vector<32x128xf32>, vector<8x128xf32> -> vector<8x128xf32>
    %75 = arith.addf %71, %74 : vector<8x128xf32>
    %76 = vector.extract_strided_slice %75 {offsets = [0, 0], sizes = [8, 96], strides = [1, 1]} : vector<8x128xf32> to vector<8x96xf32>
    %77 = arith.negf %76 : vector<8x96xf32>
    %78 = math.exp %77 : vector<8x96xf32>
    %cst_50 = arith.constant 1.000000e+00 : f32
    %79 = vector.broadcast %cst_50 : f32 to vector<8x96xf32>
    %80 = arith.addf %79, %78 : vector<8x96xf32>
    %81 = arith.divf %79, %80 : vector<8x96xf32>
    %82 = vector.extract_strided_slice %81 {offsets = [0, 0], sizes = [8, 32], strides = [1, 1]} : vector<8x96xf32> to vector<8x32xf32>
    %83 = vector.extract_strided_slice %81 {offsets = [0, 32], sizes = [8, 32], strides = [1, 1]} : vector<8x96xf32> to vector<8x32xf32>
    %84 = vector.extract_strided_slice %81 {offsets = [0, 64], sizes = [8, 32], strides = [1, 1]} : vector<8x96xf32> to vector<8x32xf32>
    %85 = vector.extract_strided_slice %75 {offsets = [0, 96], sizes = [8, 32], strides = [1, 1]} : vector<8x128xf32> to vector<8x32xf32>
    %86 = math.tanh %85 : vector<8x32xf32>
    %87 = arith.mulf %83, %73 : vector<8x32xf32>
    %88 = arith.mulf %82, %86 : vector<8x32xf32>
    %89 = arith.addf %87, %88 : vector<8x32xf32>
    %90 = math.tanh %89 : vector<8x32xf32>
    %91 = arith.mulf %84, %90 : vector<8x32xf32>
    %c0_51 = arith.constant 0 : index
    %c0_52 = arith.constant 0 : index
    %92 = vector.load %arg11[%c0_51, %c0_52] : memref<8x32xf32, #tpu.memory_space<vmem>>, vector<8x32xf32>
    tpu.vector_store %arg11[%c0_51, %c0_52], %89 {strides = array<i32>} : memref<8x32xf32, #tpu.memory_space<vmem>>, vector<8x32xf32>,
    %c0_53 = arith.constant 0 : index
    %c0_54 = arith.constant 0 : index
    %93 = vector.load %arg10[%c0_53, %c0_54] : memref<8x32xf32, #tpu.memory_space<vmem>>, vector<8x32xf32>
    tpu.vector_store %arg10[%c0_53, %c0_54], %91 {strides = array<i32>} : memref<8x32xf32, #tpu.memory_space<vmem>>, vector<8x32xf32>,
    %c3_i32 = arith.constant 3 : i32
    %c8_i32_55 = arith.constant 8 : i32
    %94 = arith.muli %c3_i32, %c8_i32_55 : i32
    %95 = tpu.assume_multiple %94, 8 : i32
    %96 = arith.index_cast %95 : i32 to index
    %c0_56 = arith.constant 0 : index
    %97 = vector.load %arg9[%96, %c0_56] : memref<56x128xf32, #tpu.memory_space<vmem>>, vector<8x128xf32>
    %c0_57 = arith.constant 0 : index
    %c0_58 = arith.constant 0 : index
    %98 = vector.load %arg10[%c0_57, %c0_58] : memref<8x32xf32, #tpu.memory_space<vmem>>, vector<8x32xf32>
    %c0_59 = arith.constant 0 : index
    %c0_60 = arith.constant 0 : index
    %99 = vector.load %arg11[%c0_59, %c0_60] : memref<8x32xf32, #tpu.memory_space<vmem>>, vector<8x32xf32>
    %cst_61 = arith.constant dense<0.000000e+00> : vector<8x128xf32>
    %100 = tpu.matmul %98, %15, %cst_61 {dimension_numbers = #tpu.dot_dimension_numbers<[1], [0], [0], [1], [0, 0, 1, 1], [], []>} : vector<8x32xf32>, vector<32x128xf32>, vector<8x128xf32> -> vector<8x128xf32>
    %101 = arith.addf %97, %100 : vector<8x128xf32>
    %102 = vector.extract_strided_slice %101 {offsets = [0, 0], sizes = [8, 96], strides = [1, 1]} : vector<8x128xf32> to vector<8x96xf32>
    %103 = arith.negf %102 : vector<8x96xf32>
    %104 = math.exp %103 : vector<8x96xf32>
    %cst_62 = arith.constant 1.000000e+00 : f32
    %105 = vector.broadcast %cst_62 : f32 to vector<8x96xf32>
    %106 = arith.addf %105, %104 : vector<8x96xf32>
    %107 = arith.divf %105, %106 : vector<8x96xf32>
    %108 = vector.extract_strided_slice %107 {offsets = [0, 0], sizes = [8, 32], strides = [1, 1]} : vector<8x96xf32> to vector<8x32xf32>
    %109 = vector.extract_strided_slice %107 {offsets = [0, 32], sizes = [8, 32], strides = [1, 1]} : vector<8x96xf32> to vector<8x32xf32>
    %110 = vector.extract_strided_slice %107 {offsets = [0, 64], sizes = [8, 32], strides = [1, 1]} : vector<8x96xf32> to vector<8x32xf32>
    %111 = vector.extract_strided_slice %101 {offsets = [0, 96], sizes = [8, 32], strides = [1, 1]} : vector<8x128xf32> to vector<8x32xf32>
    %112 = math.tanh %111 : vector<8x32xf32>
    %113 = arith.mulf %109, %99 : vector<8x32xf32>
    %114 = arith.mulf %108, %112 : vector<8x32xf32>
    %115 = arith.addf %113, %114 : vector<8x32xf32>
    %116 = math.tanh %115 : vector<8x32xf32>
    %117 = arith.mulf %110, %116 : vector<8x32xf32>
    %c0_63 = arith.constant 0 : index
    %c0_64 = arith.constant 0 : index
    %118 = vector.load %arg11[%c0_63, %c0_64] : memref<8x32xf32, #tpu.memory_space<vmem>>, vector<8x32xf32>
    tpu.vector_store %arg11[%c0_63, %c0_64], %115 {strides = array<i32>} : memref<8x32xf32, #tpu.memory_space<vmem>>, vector<8x32xf32>,
    %c0_65 = arith.constant 0 : index
    %c0_66 = arith.constant 0 : index
    %119 = vector.load %arg10[%c0_65, %c0_66] : memref<8x32xf32, #tpu.memory_space<vmem>>, vector<8x32xf32>
    tpu.vector_store %arg10[%c0_65, %c0_66], %117 {strides = array<i32>} : memref<8x32xf32, #tpu.memory_space<vmem>>, vector<8x32xf32>,
    %c4_i32 = arith.constant 4 : i32
    %c8_i32_67 = arith.constant 8 : i32
    %120 = arith.muli %c4_i32, %c8_i32_67 : i32
    %121 = tpu.assume_multiple %120, 8 : i32
    %122 = arith.index_cast %121 : i32 to index
    %c0_68 = arith.constant 0 : index
    %123 = vector.load %arg9[%122, %c0_68] : memref<56x128xf32, #tpu.memory_space<vmem>>, vector<8x128xf32>
    %c0_69 = arith.constant 0 : index
    %c0_70 = arith.constant 0 : index
    %124 = vector.load %arg10[%c0_69, %c0_70] : memref<8x32xf32, #tpu.memory_space<vmem>>, vector<8x32xf32>
    %c0_71 = arith.constant 0 : index
    %c0_72 = arith.constant 0 : index
    %125 = vector.load %arg11[%c0_71, %c0_72] : memref<8x32xf32, #tpu.memory_space<vmem>>, vector<8x32xf32>
    %cst_73 = arith.constant dense<0.000000e+00> : vector<8x128xf32>
    %126 = tpu.matmul %124, %15, %cst_73 {dimension_numbers = #tpu.dot_dimension_numbers<[1], [0], [0], [1], [0, 0, 1, 1], [], []>} : vector<8x32xf32>, vector<32x128xf32>, vector<8x128xf32> -> vector<8x128xf32>
    %127 = arith.addf %123, %126 : vector<8x128xf32>
    %128 = vector.extract_strided_slice %127 {offsets = [0, 0], sizes = [8, 96], strides = [1, 1]} : vector<8x128xf32> to vector<8x96xf32>
    %129 = arith.negf %128 : vector<8x96xf32>
    %130 = math.exp %129 : vector<8x96xf32>
    %cst_74 = arith.constant 1.000000e+00 : f32
    %131 = vector.broadcast %cst_74 : f32 to vector<8x96xf32>
    %132 = arith.addf %131, %130 : vector<8x96xf32>
    %133 = arith.divf %131, %132 : vector<8x96xf32>
    %134 = vector.extract_strided_slice %133 {offsets = [0, 0], sizes = [8, 32], strides = [1, 1]} : vector<8x96xf32> to vector<8x32xf32>
    %135 = vector.extract_strided_slice %133 {offsets = [0, 32], sizes = [8, 32], strides = [1, 1]} : vector<8x96xf32> to vector<8x32xf32>
    %136 = vector.extract_strided_slice %133 {offsets = [0, 64], sizes = [8, 32], strides = [1, 1]} : vector<8x96xf32> to vector<8x32xf32>
    %137 = vector.extract_strided_slice %127 {offsets = [0, 96], sizes = [8, 32], strides = [1, 1]} : vector<8x128xf32> to vector<8x32xf32>
    %138 = math.tanh %137 : vector<8x32xf32>
    %139 = arith.mulf %135, %125 : vector<8x32xf32>
    %140 = arith.mulf %134, %138 : vector<8x32xf32>
    %141 = arith.addf %139, %140 : vector<8x32xf32>
    %142 = math.tanh %141 : vector<8x32xf32>
    %143 = arith.mulf %136, %142 : vector<8x32xf32>
    %c0_75 = arith.constant 0 : index
    %c0_76 = arith.constant 0 : index
    %144 = vector.load %arg11[%c0_75, %c0_76] : memref<8x32xf32, #tpu.memory_space<vmem>>, vector<8x32xf32>
    tpu.vector_store %arg11[%c0_75, %c0_76], %141 {strides = array<i32>} : memref<8x32xf32, #tpu.memory_space<vmem>>, vector<8x32xf32>,
    %c0_77 = arith.constant 0 : index
    %c0_78 = arith.constant 0 : index
    %145 = vector.load %arg10[%c0_77, %c0_78] : memref<8x32xf32, #tpu.memory_space<vmem>>, vector<8x32xf32>
    tpu.vector_store %arg10[%c0_77, %c0_78], %143 {strides = array<i32>} : memref<8x32xf32, #tpu.memory_space<vmem>>, vector<8x32xf32>,
    %c5_i32 = arith.constant 5 : i32
    %c8_i32_79 = arith.constant 8 : i32
    %146 = arith.muli %c5_i32, %c8_i32_79 : i32
    %147 = tpu.assume_multiple %146, 8 : i32
    %148 = arith.index_cast %147 : i32 to index
    %c0_80 = arith.constant 0 : index
    %149 = vector.load %arg9[%148, %c0_80] : memref<56x128xf32, #tpu.memory_space<vmem>>, vector<8x128xf32>
    %c0_81 = arith.constant 0 : index
    %c0_82 = arith.constant 0 : index
    %150 = vector.load %arg10[%c0_81, %c0_82] : memref<8x32xf32, #tpu.memory_space<vmem>>, vector<8x32xf32>
    %c0_83 = arith.constant 0 : index
    %c0_84 = arith.constant 0 : index
    %151 = vector.load %arg11[%c0_83, %c0_84] : memref<8x32xf32, #tpu.memory_space<vmem>>, vector<8x32xf32>
    %cst_85 = arith.constant dense<0.000000e+00> : vector<8x128xf32>
    %152 = tpu.matmul %150, %15, %cst_85 {dimension_numbers = #tpu.dot_dimension_numbers<[1], [0], [0], [1], [0, 0, 1, 1], [], []>} : vector<8x32xf32>, vector<32x128xf32>, vector<8x128xf32> -> vector<8x128xf32>
    %153 = arith.addf %149, %152 : vector<8x128xf32>
    %154 = vector.extract_strided_slice %153 {offsets = [0, 0], sizes = [8, 96], strides = [1, 1]} : vector<8x128xf32> to vector<8x96xf32>
    %155 = arith.negf %154 : vector<8x96xf32>
    %156 = math.exp %155 : vector<8x96xf32>
    %cst_86 = arith.constant 1.000000e+00 : f32
    %157 = vector.broadcast %cst_86 : f32 to vector<8x96xf32>
    %158 = arith.addf %157, %156 : vector<8x96xf32>
    %159 = arith.divf %157, %158 : vector<8x96xf32>
    %160 = vector.extract_strided_slice %159 {offsets = [0, 0], sizes = [8, 32], strides = [1, 1]} : vector<8x96xf32> to vector<8x32xf32>
    %161 = vector.extract_strided_slice %159 {offsets = [0, 32], sizes = [8, 32], strides = [1, 1]} : vector<8x96xf32> to vector<8x32xf32>
    %162 = vector.extract_strided_slice %159 {offsets = [0, 64], sizes = [8, 32], strides = [1, 1]} : vector<8x96xf32> to vector<8x32xf32>
    %163 = vector.extract_strided_slice %153 {offsets = [0, 96], sizes = [8, 32], strides = [1, 1]} : vector<8x128xf32> to vector<8x32xf32>
    %164 = math.tanh %163 : vector<8x32xf32>
    %165 = arith.mulf %161, %151 : vector<8x32xf32>
    %166 = arith.mulf %160, %164 : vector<8x32xf32>
    %167 = arith.addf %165, %166 : vector<8x32xf32>
    %168 = math.tanh %167 : vector<8x32xf32>
    %169 = arith.mulf %162, %168 : vector<8x32xf32>
    %c0_87 = arith.constant 0 : index
    %c0_88 = arith.constant 0 : index
    %170 = vector.load %arg11[%c0_87, %c0_88] : memref<8x32xf32, #tpu.memory_space<vmem>>, vector<8x32xf32>
    tpu.vector_store %arg11[%c0_87, %c0_88], %167 {strides = array<i32>} : memref<8x32xf32, #tpu.memory_space<vmem>>, vector<8x32xf32>,
    %c0_89 = arith.constant 0 : index
    %c0_90 = arith.constant 0 : index
    %171 = vector.load %arg10[%c0_89, %c0_90] : memref<8x32xf32, #tpu.memory_space<vmem>>, vector<8x32xf32>
    tpu.vector_store %arg10[%c0_89, %c0_90], %169 {strides = array<i32>} : memref<8x32xf32, #tpu.memory_space<vmem>>, vector<8x32xf32>,
    %c6_i32 = arith.constant 6 : i32
    %c8_i32_91 = arith.constant 8 : i32
    %172 = arith.muli %c6_i32, %c8_i32_91 : i32
    %173 = tpu.assume_multiple %172, 8 : i32
    %174 = arith.index_cast %173 : i32 to index
    %c0_92 = arith.constant 0 : index
    %175 = vector.load %arg9[%174, %c0_92] : memref<56x128xf32, #tpu.memory_space<vmem>>, vector<8x128xf32>
    %c0_93 = arith.constant 0 : index
    %c0_94 = arith.constant 0 : index
    %176 = vector.load %arg10[%c0_93, %c0_94] : memref<8x32xf32, #tpu.memory_space<vmem>>, vector<8x32xf32>
    %c0_95 = arith.constant 0 : index
    %c0_96 = arith.constant 0 : index
    %177 = vector.load %arg11[%c0_95, %c0_96] : memref<8x32xf32, #tpu.memory_space<vmem>>, vector<8x32xf32>
    %cst_97 = arith.constant dense<0.000000e+00> : vector<8x128xf32>
    %178 = tpu.matmul %176, %15, %cst_97 {dimension_numbers = #tpu.dot_dimension_numbers<[1], [0], [0], [1], [0, 0, 1, 1], [], []>} : vector<8x32xf32>, vector<32x128xf32>, vector<8x128xf32> -> vector<8x128xf32>
    %179 = arith.addf %175, %178 : vector<8x128xf32>
    %180 = vector.extract_strided_slice %179 {offsets = [0, 0], sizes = [8, 96], strides = [1, 1]} : vector<8x128xf32> to vector<8x96xf32>
    %181 = arith.negf %180 : vector<8x96xf32>
    %182 = math.exp %181 : vector<8x96xf32>
    %cst_98 = arith.constant 1.000000e+00 : f32
    %183 = vector.broadcast %cst_98 : f32 to vector<8x96xf32>
    %184 = arith.addf %183, %182 : vector<8x96xf32>
    %185 = arith.divf %183, %184 : vector<8x96xf32>
    %186 = vector.extract_strided_slice %185 {offsets = [0, 0], sizes = [8, 32], strides = [1, 1]} : vector<8x96xf32> to vector<8x32xf32>
    %187 = vector.extract_strided_slice %185 {offsets = [0, 32], sizes = [8, 32], strides = [1, 1]} : vector<8x96xf32> to vector<8x32xf32>
    %188 = vector.extract_strided_slice %185 {offsets = [0, 64], sizes = [8, 32], strides = [1, 1]} : vector<8x96xf32> to vector<8x32xf32>
    %189 = vector.extract_strided_slice %179 {offsets = [0, 96], sizes = [8, 32], strides = [1, 1]} : vector<8x128xf32> to vector<8x32xf32>
    %190 = math.tanh %189 : vector<8x32xf32>
    %191 = arith.mulf %187, %177 : vector<8x32xf32>
    %192 = arith.mulf %186, %190 : vector<8x32xf32>
    %193 = arith.addf %191, %192 : vector<8x32xf32>
    %194 = math.tanh %193 : vector<8x32xf32>
    %195 = arith.mulf %188, %194 : vector<8x32xf32>
    %c0_99 = arith.constant 0 : index
    %c0_100 = arith.constant 0 : index
    %196 = vector.load %arg11[%c0_99, %c0_100] : memref<8x32xf32, #tpu.memory_space<vmem>>, vector<8x32xf32>
    tpu.vector_store %arg11[%c0_99, %c0_100], %193 {strides = array<i32>} : memref<8x32xf32, #tpu.memory_space<vmem>>, vector<8x32xf32>,
    %c0_101 = arith.constant 0 : index
    %c0_102 = arith.constant 0 : index
    %197 = vector.load %arg10[%c0_101, %c0_102] : memref<8x32xf32, #tpu.memory_space<vmem>>, vector<8x32xf32>
    tpu.vector_store %arg10[%c0_101, %c0_102], %195 {strides = array<i32>} : memref<8x32xf32, #tpu.memory_space<vmem>>, vector<8x32xf32>,
    %c7_i32 = arith.constant 7 : i32
    %c0_103 = arith.constant 0 : index
    %c0_104 = arith.constant 0 : index
    %198 = vector.load %arg10[%c0_103, %c0_104] : memref<8x32xf32, #tpu.memory_space<vmem>>, vector<8x32xf32>
    %c0_105 = arith.constant 0 : index
    %c0_106 = arith.constant 0 : index
    %199 = vector.load %arg6[%c0_105, %c0_106] : memref<32x32xf32, #tpu.memory_space<vmem>>, vector<32x32xf32>
    %cst_107 = arith.constant dense<0.000000e+00> : vector<8x32xf32>
    %200 = tpu.matmul %198, %199, %cst_107 {dimension_numbers = #tpu.dot_dimension_numbers<[1], [0], [0], [1], [0, 0, 1, 1], [], []>} : vector<8x32xf32>, vector<32x32xf32>, vector<8x32xf32> -> vector<8x32xf32>
    %c0_108 = arith.constant 0 : index
    %c0_109 = arith.constant 0 : index
    %201 = vector.load %arg7[%c0_108, %c0_109] : memref<1x32xf32, #tpu.memory_space<vmem>>, vector<1x32xf32>
    %202 = vector.broadcast %201 : vector<1x32xf32> to vector<8x32xf32>
    %203 = arith.addf %200, %202 : vector<8x32xf32>
    %c0_110 = arith.constant 0 : index
    %c0_111 = arith.constant 0 : index
    %204 = vector.load %arg8[%c0_110, %c0_111] : memref<8x32xf32, #tpu.memory_space<vmem>>, vector<8x32xf32>
    tpu.vector_store %arg8[%c0_110, %c0_111], %203 {strides = array<i32>} : memref<8x32xf32, #tpu.memory_space<vmem>>, vector<8x32xf32>,
    return
  }
}

</mosaic_0001>

<llo_original>
// kernel: tpu_custom_call.1
$region0: #{tpu_custom_call.1}
  #allocation0 [shape = 'u32[]', space=smem, size = 0x4, offset = 0x4, fixed_abs, tag = 'smem constant byte address 0x4 - core index']
  #allocation1 [shape = 'u32[144,128]{1,0:T(1,128)}', space=vmem, size = 0x12000, scoped, tag = 'internal scratch']
  #allocation2 [shape = 'f32[56,128]{1,0:T(8,128)}', space=vmem, size = 0x7000, scoped, tag = 'scratch operand']
  #allocation3 [shape = 'f32[8,32]{1,0:T(8,128)}', space=vmem, size = 0x1000, scoped, tag = 'scratch operand']
  #allocation4 [shape = 'f32[8,32]{1,0:T(8,128)}', space=vmem, size = 0x1000, scoped, tag = 'scratch operand']
  %s0 = inlined_call_operand.hbm [shape: f32[56,81], index: 0, kind: input, shape index: {}]
  %s1 = inlined_call_operand.hbm [shape: f32[56,81], index: 1, kind: input, shape index: {}]
  %s2 = inlined_call_operand.hbm [shape: f32[81,128], index: 2, kind: input, shape index: {}]
  %s3 = inlined_call_operand.hbm [shape: f32[81,128], index: 3, kind: input, shape index: {}]
  %s4 = inlined_call_operand.vmem [shape: f32[1,128], index: 4, kind: input, shape index: {}]
  %s5 = inlined_call_operand.hbm [shape: f32[32,128], index: 5, kind: input, shape index: {}]
  %s6 = inlined_call_operand.hbm [shape: f32[32,32], index: 6, kind: input, shape index: {}]
  %s7 = inlined_call_operand.vmem [shape: f32[1,32], index: 7, kind: input, shape index: {}]
  %s8 = inlined_call_operand.hbm [shape: f32[8,32], index: 8, kind: output, shape index: {}]
  %s9 = sld [smem:[#allocation0]]
  $region66: #{tpu_custom_call.1} parent=0
    _
  %s11 = ssub.s32 1, %s9
  %s12 = scalar_select 0, %s11, %s9
  $region1: #{tpu_custom_call.1} parent=0
    #allocation5 [shape = 'u8[28672]{0}', space=vmem, size = 0x7000, scoped, tag = 'input window, operand 0, single buffered']
    #allocation6 [shape = 's32[1]{0}', space=sflag, size = 0x4, scoped, tag = 'scoped memory for tpu_custom_call.1']
    #allocation7 [shape = 's32[1]{0}', space=sflag, size = 0x4, scoped, tag = 'scoped memory for tpu_custom_call.1']
    #allocation8 [shape = 'u8[28672]{0}', space=vmem, size = 0x7000, scoped, tag = 'input window, operand 1, single buffered']
    #allocation9 [shape = 's32[1]{0}', space=sflag, size = 0x4, scoped, tag = 'scoped memory for tpu_custom_call.1']
    #allocation10 [shape = 'u8[45056]{0}', space=vmem, size = 0xb000, scoped, tag = 'input window, operand 2, single buffered']
    #allocation11 [shape = 'u8[45056]{0}', space=vmem, size = 0xb000, scoped, tag = 'input window, operand 3, single buffered']
    #allocation12 [shape = 's32[1]{0}', space=sflag, size = 0x4, scoped, tag = 'scoped memory for tpu_custom_call.1']
    #allocation13 [shape = 'u8[16384]{0}', space=vmem, size = 0x4000, scoped, tag = 'input window, operand 5, single buffered']
    #allocation14 [shape = 'u8[16384]{0}', space=vmem, size = 0x4000, scoped, tag = 'input window, operand 6, single buffered']
    #allocation15 [shape = 's32[1]{0}', space=sflag, size = 0x4, scoped, tag = 'scoped memory for tpu_custom_call.1']
    #allocation16 [shape = 'u8[4096]{0}', space=vmem, size = 0x1000, scoped, tag = 'output window, operand 0, single buffered']
    %13 = vsyncpa [#allocation6], 0
    %14 = vsyncpa [#allocation9], 0
    %15 = vsyncpa [#allocation12], 0
    %16 = vsyncpa [#allocation15], 0
    %17 = vsyncpa [#allocation7], 0
    // Predicated region
    $region2: #{tpu_custom_call.1} parent=1 // pred_check
      _
    $region3: #{tpu_custom_call.1} parent=1 // pred_check_branch
      %19 = sbr.rel (0) target = $region5
    $region4: #{tpu_custom_call.1} parent=1 // pred_region
      %s21 = ssub.s32 896, 896
      %22 = vsyncadd [#allocation6], %s21
      %s23 = sshll.u32 [#allocation5], 4
      %s24 = int_to_ptr.vmem [resolvable:$true] %s23
      %29 = dma.hbm_to_vmem [thread:$0]  %s0, 896, %s24, [#allocation6], 128, 128, 8
    $region5: #{tpu_custom_call.1} parent=1 // pred_fallthru
      _
    // Predicated region
    $region6: #{tpu_custom_call.1} parent=1 // pred_check
      _
    $region7: #{tpu_custom_call.1} parent=1 // pred_check_branch
      %31 = sbr.rel (0) target = $region9
    $region8: #{tpu_custom_call.1} parent=1 // pred_region
      %s33 = ssub.s32 896, 896
      %34 = vsyncadd [#allocation9], %s33
      %s35 = sshll.u32 [#allocation8], 4
      %s36 = int_to_ptr.vmem [resolvable:$true] %s35
      %41 = dma.hbm_to_vmem [thread:$0]  %s1, 896, %s36, [#allocation9], 128, 128, 8
    $region9: #{tpu_custom_call.1} parent=1 // pred_fallthru
      _
    // Predicated region
    $region10: #{tpu_custom_call.1} parent=1 // pred_check
      _
    $region11: #{tpu_custom_call.1} parent=1 // pred_check_branch
      %43 = sbr.rel (0) target = $region13
    $region12: #{tpu_custom_call.1} parent=1 // pred_region
      %s45 = ssub.s32 1408, 1408
      %46 = vsyncadd [#allocation9], %s45
      %s47 = sshll.u32 [#allocation10], 4
      %s48 = int_to_ptr.vmem [resolvable:$true] %s47
      %53 = dma.hbm_to_vmem [thread:$0]  %s2, 1408, %s48, [#allocation9], 128, 128, 8
    $region13: #{tpu_custom_call.1} parent=1 // pred_fallthru
      _
    // Predicated region
    $region14: #{tpu_custom_call.1} parent=1 // pred_check
      _
    $region15: #{tpu_custom_call.1} parent=1 // pred_check_branch
      %55 = sbr.rel (0) target = $region17
    $region16: #{tpu_custom_call.1} parent=1 // pred_region
      %s57 = ssub.s32 1408, 1408
      %58 = vsyncadd [#allocation12], %s57
      %s59 = sshll.u32 [#allocation11], 4
      %s60 = int_to_ptr.vmem [resolvable:$true] %s59
      %65 = dma.hbm_to_vmem [thread:$0]  %s3, 1408, %s60, [#allocation12], 128, 128, 8
    $region17: #{tpu_custom_call.1} parent=1 // pred_fallthru
      _
    // Predicated region
    $region18: #{tpu_custom_call.1} parent=1 // pred_check
      _
    $region19: #{tpu_custom_call.1} parent=1 // pred_check_branch
      %67 = sbr.rel (0) target = $region21
    $region20: #{tpu_custom_call.1} parent=1 // pred_region
      _
    $region21: #{tpu_custom_call.1} parent=1 // pred_fallthru
      _
    // Predicated region
    $region22: #{tpu_custom_call.1} parent=1 // pred_check
      _
    $region23: #{tpu_custom_call.1} parent=1 // pred_check_branch
      %69 = sbr.rel (0) target = $region25
    $region24: #{tpu_custom_call.1} parent=1 // pred_region
      %s71 = ssub.s32 512, 512
      %72 = vsyncadd [#allocation12], %s71
      %s73 = sshll.u32 [#allocation13], 4
      %s74 = int_to_ptr.vmem [resolvable:$true] %s73
      %79 = dma.hbm_to_vmem [thread:$0]  %s5, 512, %s74, [#allocation12], 128, 128, 8
    $region25: #{tpu_custom_call.1} parent=1 // pred_fallthru
      _
    // Predicated region
    $region26: #{tpu_custom_call.1} parent=1 // pred_check
      _
    $region27: #{tpu_custom_call.1} parent=1 // pred_check_branch
      %81 = sbr.rel (0) target = $region29
    $region28: #{tpu_custom_call.1} parent=1 // pred_region
      %s83 = ssub.s32 512, 512
      %84 = vsyncadd [#allocation15], %s83
      %s85 = sshll.u32 [#allocation14], 4
      %s86 = int_to_ptr.vmem [resolvable:$true] %s85
      %91 = dma.hbm_to_vmem [thread:$0]  %s6, 512, %s86, [#allocation15], 128, 128, 8
    $region29: #{tpu_custom_call.1} parent=1 // pred_fallthru
      _
    // Predicated region
    $region30: #{tpu_custom_call.1} parent=1 // pred_check
      _
    $region31: #{tpu_custom_call.1} parent=1 // pred_check_branch
      %93 = sbr.rel (0) target = $region33
    $region32: #{tpu_custom_call.1} parent=1 // pred_region
      _
    $region33: #{tpu_custom_call.1} parent=1 // pred_fallthru
      _
    // Predicated region
    $region34: #{tpu_custom_call.1} parent=1 // pred_check
      _
    $region35: #{tpu_custom_call.1} parent=1 // pred_check_branch
      %95 = sbr.rel (0) target = $region37
    $region36: #{tpu_custom_call.1} parent=1 // pred_region
      %96 = dma.done [#allocation6], 896
    $region37: #{tpu_custom_call.1} parent=1 // pred_fallthru
      _
    // Predicated region
    $region38: #{tpu_custom_call.1} parent=1 // pred_check
      _
    $region39: #{tpu_custom_call.1} parent=1 // pred_check_branch
      %98 = sbr.rel (0) target = $region41
    $region40: #{tpu_custom_call.1} parent=1 // pred_region
      %99 = dma.done [#allocation9], 896
    $region41: #{tpu_custom_call.1} parent=1 // pred_fallthru
      _
    // Predicated region
    $region42: #{tpu_custom_call.1} parent=1 // pred_check
      _
    $region43: #{tpu_custom_call.1} parent=1 // pred_check_branch
      %101 = sbr.rel (0) target = $region45
    $region44: #{tpu_custom_call.1} parent=1 // pred_region
      %102 = dma.done [#allocation9], 1408
    $region45: #{tpu_custom_call.1} parent=1 // pred_fallthru
      _
    // Predicated region
    $region46: #{tpu_custom_call.1} parent=1 // pred_check
      _
    $region47: #{tpu_custom_call.1} parent=1 // pred_check_branch
      %104 = sbr.rel (0) target = $region49
    $region48: #{tpu_custom_call.1} parent=1 // pred_region
      %105 = dma.done [#allocation12], 1408
    $region49: #{tpu_custom_call.1} parent=1 // pred_fallthru
      _
    // Predicated region
    $region50: #{tpu_custom_call.1} parent=1 // pred_check
      _
    $region51: #{tpu_custom_call.1} parent=1 // pred_check_branch
      %107 = sbr.rel (0) target = $region53
    $region52: #{tpu_custom_call.1} parent=1 // pred_region
      %108 = dma.done [#allocation12], 512
    $region53: #{tpu_custom_call.1} parent=1 // pred_fallthru
      _
    // Predicated region
    $region54: #{tpu_custom_call.1} parent=1 // pred_check
      _
    $region55: #{tpu_custom_call.1} parent=1 // pred_check_branch
      %110 = sbr.rel (0) target = $region57
    $region56: #{tpu_custom_call.1} parent=1 // pred_region
      %111 = dma.done [#allocation15], 512
    $region57: #{tpu_custom_call.1} parent=1 // pred_fallthru
      _
    %v112 = vld [vmem:[#allocation5] sm:$0xff]
    %v113 = vld [vmem:[#allocation5 + $0x8] sm:$0xff]
    %v114 = vld [vmem:[#allocation5 + $0x10] sm:$0xff]
    %v115 = vld [vmem:[#allocation5 + $0x18] sm:$0xff]
    %v116 = vld [vmem:[#allocation5 + $0x20] sm:$0xff]
    %v117 = vld [vmem:[#allocation5 + $0x28] sm:$0xff]
    %v118 = vld [vmem:[#allocation5 + $0x30] sm:$0xff]
    %v119 = vld [vmem:[#allocation10] sm:$0xff]
    %v120 = vld [vmem:[#allocation10 + $0x8] sm:$0xff]
    %v121 = vld [vmem:[#allocation10 + $0x10] sm:$0xff]
    %v122 = vld [vmem:[#allocation10 + $0x18] sm:$0xff]
    %v123 = vld [vmem:[#allocation10 + $0x20] sm:$0xff]
    %v124 = vld [vmem:[#allocation10 + $0x28] sm:$0xff]
    %v125 = vld [vmem:[#allocation10 + $0x30] sm:$0xff]
    %v126 = vld [vmem:[#allocation10 + $0x38] sm:$0xff]
    %v127 = vld [vmem:[#allocation10 + $0x40] sm:$0xff]
    %v128 = vld [vmem:[#allocation10 + $0x48] sm:$0xff]
    %v129 = vld [vmem:[#allocation10 + $0x50] sm:$0x1]
    %v130 = vld [vmem:[#allocation8] sm:$0xff]
    %v131 = vld [vmem:[#allocation8 + $0x8] sm:$0xff]
    %v132 = vld [vmem:[#allocation8 + $0x10] sm:$0xff]
    %v133 = vld [vmem:[#allocation8 + $0x18] sm:$0xff]
    %v134 = vld [vmem:[#allocation8 + $0x20] sm:$0xff]
    %v135 = vld [vmem:[#allocation8 + $0x28] sm:$0xff]
    %v136 = vld [vmem:[#allocation8 + $0x30] sm:$0xff]
    %v137 = vld [vmem:[#allocation11] sm:$0xff]
    %v138 = vld [vmem:[#allocation11 + $0x8] sm:$0xff]
    %v139 = vld [vmem:[#allocation11 + $0x10] sm:$0xff]
    %v140 = vld [vmem:[#allocation11 + $0x18] sm:$0xff]
    %v141 = vld [vmem:[#allocation11 + $0x20] sm:$0xff]
    %v142 = vld [vmem:[#allocation11 + $0x28] sm:$0xff]
    %v143 = vld [vmem:[#allocation11 + $0x30] sm:$0xff]
    %v144 = vld [vmem:[#allocation11 + $0x38] sm:$0xff]
    %v145 = vld [vmem:[#allocation11 + $0x40] sm:$0xff]
    %v146 = vld [vmem:[#allocation11 + $0x48] sm:$0xff]
    %v147 = vld [vmem:[#allocation11 + $0x50] sm:$0x1]
    %vm148 = vcmask 662528
    %v150 = vsel %vm148, %v130, 0
    %v153 = vsel %vm148, %v131, 0
    %v156 = vsel %vm148, %v132, 0
    %v159 = vsel %vm148, %v133, 0
    %v162 = vsel %vm148, %v134, 0
    %v165 = vsel %vm148, %v135, 0
    %v168 = vsel %vm148, %v136, 0
    %vm170 = vcmask 1040384
    %v172 = vsel %vm170, %v147, 0
    %174 = vmatprep.subr.mxu0 0.0
    %175 = vmatpush1.msra.mxu0 %v137
    %176 = vmatprep.subr.mxu0 0.0
    %177 = vmatpush1.msra.mxu0 %v138
    %178 = vmatprep.subr.mxu0 0.0
    %179 = vmatpush1.msra.mxu0 %v139
    %180 = vmatprep.subr.mxu0 0.0
    %181 = vmatpush1.msra.mxu0 %v140
    %182 = vmatprep.subr.mxu0 0.0
    %183 = vmatpush1.msra.mxu0 %v141
    %184 = vmatprep.subr.mxu0 0.0
    %185 = vmatpush1.msra.mxu0 %v142
    %186 = vmatprep.subr.mxu0 0.0
    %187 = vmatpush1.msra.mxu0 %v143
    %188 = vmatprep.subr.mxu0 0.0
    %189 = vmatpush1.msra.mxu0 %v144
    %190 = vmatprep.subr.mxu0 0.0
    %191 = vmatpush1.msra.mxu0 %v145
    %192 = vmatprep.subr.mxu0 0.0
    %193 = vmatpush1.msra.mxu0 %v146
    %194 = vmatprep.subr.mxu0 0.0
    %195 = vmatpush1.msra.mxu0 %v172
    %196 = vmatprep.subr.mxu0 0.0
    %197 = vmatpush1.msra.mxu0 0.0
    %198 = vmatprep.subr.mxu0 0.0
    %199 = vmatpush1.msra.mxu0 0.0
    %200 = vmatprep.subr.mxu0 0.0
    %201 = vmatpush1.msra.mxu0 0.0
    %202 = vmatprep.subr.mxu0 0.0
    %203 = vmatpush1.msra.mxu0 0.0
    %204 = vmatprep.subr.mxu0 0.0
    %205 = vmatpush1.msra.mxu0 0.0
    %206 = vmatprep.subr.mxu0 0.0
    %207 = vmatpush1.msra.mxu0 0.0
    %208 = vmatprep.subr.mxu0 0.0
    %209 = vmatpush1.msra.mxu0 0.0
    %210 = vmatprep.subr.mxu0 0.0
    %211 = vmatpush1.msra.mxu0 0.0
    %212 = vmatprep.subr.mxu0 0.0
    %213 = vmatpush1.msra.mxu0 0.0
    %214 = vmatprep.subr.mxu0 0.0
    %215 = vmatpush1.msra.mxu0 0.0
    %216 = vmatprep.subr.mxu0 0.0
    %217 = vmatpush1.msra.mxu0 0.0
    %218 = vmatprep.subr.mxu0 0.0
    %219 = vmatpush1.msra.mxu0 0.0
    %220 = vmatprep.subr.mxu0 0.0
    %221 = vmatpush1.msra.mxu0 0.0
    %222 = vmatprep.subr.mxu0 0.0
    %223 = vmatpush1.msra.mxu0 0.0
    %224 = vmatprep.subr.mxu0 0.0
    %225 = vmatpush1.msra.mxu0 0.0
    %226 = vmatprep.subr.mxu0 0.0
    %227 = vmatpush1.msra.mxu0 0.0
    %228 = vmatprep.subr.mxu0 0.0
    %229 = vmatpush1.msra.mxu0 0.0
    %230 = vmatprep.subr.mxu0 0.0
    %231 = vmatpush1.msra.mxu0 0.0
    %232 = vmatprep.subr.mxu0 0.0
    %233 = vmatpush1.msra.mxu0 0.0
    %234 = vmatprep.subr.mxu0 0.0
    %235 = vmatpush1.msra.mxu0 0.0
    %236 = vmatprep.subr.mxu0 0.0
    %237 = vmatpush1.msra.mxu0 0.0
    %238 = vmatprep.mubr.f32.mxu0 0.0
    %239 = vmatmul.mubr.f32.gmra.mrb[0].mxu0 %v150
    %v240 = vpop.f32.mrb[0].mxu0
    %v241 = vadd.f32 0.0, %v240
    %v242 = vpop.f32.mrb[0].mxu0
    %243 = vmatprep.mubr.f32.mxu0 0.0
    %244 = vmatmul.mubr.f32.gmra.mrb[0].mxu0 %v153
    %v245 = vpop.f32.mrb[0].mxu0
    %v246 = vadd.f32 0.0, %v245
    %v247 = vpop.f32.mrb[0].mxu0
    %248 = vmatprep.mubr.f32.mxu0 0.0
    %249 = vmatmul.mubr.f32.gmra.mrb[0].mxu0 %v156
    %v250 = vpop.f32.mrb[0].mxu0
    %v251 = vadd.f32 0.0, %v250
    %v252 = vpop.f32.mrb[0].mxu0
    %253 = vmatprep.mubr.f32.mxu0 0.0
    %254 = vmatmul.mubr.f32.gmra.mrb[0].mxu0 %v159
    %v255 = vpop.f32.mrb[0].mxu0
    %v256 = vadd.f32 0.0, %v255
    %v257 = vpop.f32.mrb[0].mxu0
    %258 = vmatprep.mubr.f32.mxu0 0.0
    %259 = vmatmul.mubr.f32.gmra.mrb[0].mxu0 %v162
    %v260 = vpop.f32.mrb[0].mxu0
    %v261 = vadd.f32 0.0, %v260
    %v262 = vpop.f32.mrb[0].mxu0
    %263 = vmatprep.mubr.f32.mxu0 0.0
    %264 = vmatmul.mubr.f32.gmra.mrb[0].mxu0 %v165
    %v265 = vpop.f32.mrb[0].mxu0
    %v266 = vadd.f32 0.0, %v265
    %v267 = vpop.f32.mrb[0].mxu0
    %268 = vmatprep.mubr.f32.mxu0 0.0
    %269 = vmatmul.mubr.f32.gmra.mrb[0].mxu0 %v168
    %v270 = vpop.f32.mrb[0].mxu0
    %v271 = vadd.f32 0.0, %v270
    %v272 = vpop.f32.mrb[0].mxu0
    %273 = vdwg.mxu0
    %v275 = vsel %vm148, %v112, 0
    %v278 = vsel %vm148, %v113, 0
    %v281 = vsel %vm148, %v114, 0
    %v284 = vsel %vm148, %v115, 0
    %v287 = vsel %vm148, %v116, 0
    %v290 = vsel %vm148, %v117, 0
    %v293 = vsel %vm148, %v118, 0
    %v296 = vsel %vm170, %v129, 0
    %298 = vmatprep.subr.mxu0 0.0
    %299 = vmatpush1.msra.mxu0 %v119
    %300 = vmatprep.subr.mxu0 0.0
    %301 = vmatpush1.msra.mxu0 %v120
    %302 = vmatprep.subr.mxu0 0.0
    %303 = vmatpush1.msra.mxu0 %v121
    %304 = vmatprep.subr.mxu0 0.0
    %305 = vmatpush1.msra.mxu0 %v122
    %306 = vmatprep.subr.mxu0 0.0
    %307 = vmatpush1.msra.mxu0 %v123
    %308 = vmatprep.subr.mxu0 0.0
    %309 = vmatpush1.msra.mxu0 %v124
    %310 = vmatprep.subr.mxu0 0.0
    %311 = vmatpush1.msra.mxu0 %v125
    %312 = vmatprep.subr.mxu0 0.0
    %313 = vmatpush1.msra.mxu0 %v126
    %314 = vmatprep.subr.mxu0 0.0
    %315 = vmatpush1.msra.mxu0 %v127
    %316 = vmatprep.subr.mxu0 0.0
    %317 = vmatpush1.msra.mxu0 %v128
    %318 = vmatprep.subr.mxu0 0.0
    %319 = vmatpush1.msra.mxu0 %v296
    %320 = vmatprep.subr.mxu0 0.0
    %321 = vmatpush1.msra.mxu0 0.0
    %322 = vmatprep.subr.mxu0 0.0
    %323 = vmatpush1.msra.mxu0 0.0
    %324 = vmatprep.subr.mxu0 0.0
    %325 = vmatpush1.msra.mxu0 0.0
    %326 = vmatprep.subr.mxu0 0.0
    %327 = vmatpush1.msra.mxu0 0.0
    %328 = vmatprep.subr.mxu0 0.0
    %329 = vmatpush1.msra.mxu0 0.0
    %330 = vmatprep.subr.mxu0 0.0
    %331 = vmatpush1.msra.mxu0 0.0
    %332 = vmatprep.subr.mxu0 0.0
    %333 = vmatpush1.msra.mxu0 0.0
    %334 = vmatprep.subr.mxu0 0.0
    %335 = vmatpush1.msra.mxu0 0.0
    %336 = vmatprep.subr.mxu0 0.0
    %337 = vmatpush1.msra.mxu0 0.0
    %338 = vmatprep.subr.mxu0 0.0
    %339 = vmatpush1.msra.mxu0 0.0
    %340 = vmatprep.subr.mxu0 0.0
    %341 = vmatpush1.msra.mxu0 0.0
    %342 = vmatprep.subr.mxu0 0.0
    %343 = vmatpush1.msra.mxu0 0.0
    %344 = vmatprep.subr.mxu0 0.0
    %345 = vmatpush1.msra.mxu0 0.0
    %346 = vmatprep.subr.mxu0 0.0
    %347 = vmatpush1.msra.mxu0 0.0
    %348 = vmatprep.subr.mxu0 0.0
    %349 = vmatpush1.msra.mxu0 0.0
    %350 = vmatprep.subr.mxu0 0.0
    %351 = vmatpush1.msra.mxu0 0.0
    %352 = vmatprep.subr.mxu0 0.0
    %353 = vmatpush1.msra.mxu0 0.0
    %354 = vmatprep.subr.mxu0 0.0
    %355 = vmatpush1.msra.mxu0 0.0
    %356 = vmatprep.subr.mxu0 0.0
    %357 = vmatpush1.msra.mxu0 0.0
    %358 = vmatprep.subr.mxu0 0.0
    %359 = vmatpush1.msra.mxu0 0.0
    %360 = vmatprep.subr.mxu0 0.0
    %361 = vmatpush1.msra.mxu0 0.0
    %362 = vmatprep.mubr.f32.mxu0 0.0
    %363 = vmatmul.mubr.f32.gmra.mrb[0].mxu0 %v275
    %v364 = vpop.f32.mrb[0].mxu0
    %v365 = vadd.f32 %v241, %v364
    %v366 = vpop.f32.mrb[0].mxu0
    %367 = vmatprep.mubr.f32.mxu0 0.0
    %368 = vmatmul.mubr.f32.gmra.mrb[0].mxu0 %v278
    %v369 = vpop.f32.mrb[0].mxu0
    %v370 = vadd.f32 %v246, %v369
    %v371 = vpop.f32.mrb[0].mxu0
    %372 = vmatprep.mubr.f32.mxu0 0.0
    %373 = vmatmul.mubr.f32.gmra.mrb[0].mxu0 %v281
    %v374 = vpop.f32.mrb[0].mxu0
    %v375 = vadd.f32 %v251, %v374
    %v376 = vpop.f32.mrb[0].mxu0
    %377 = vmatprep.mubr.f32.mxu0 0.0
    %378 = vmatmul.mubr.f32.gmra.mrb[0].mxu0 %v284
    %v379 = vpop.f32.mrb[0].mxu0
    %v380 = vadd.f32 %v256, %v379
    %v381 = vpop.f32.mrb[0].mxu0
    %382 = vmatprep.mubr.f32.mxu0 0.0
    %383 = vmatmul.mubr.f32.gmra.mrb[0].mxu0 %v287
    %v384 = vpop.f32.mrb[0].mxu0
    %v385 = vadd.f32 %v261, %v384
    %v386 = vpop.f32.mrb[0].mxu0
    %387 = vmatprep.mubr.f32.mxu0 0.0
    %388 = vmatmul.mubr.f32.gmra.mrb[0].mxu0 %v290
    %v389 = vpop.f32.mrb[0].mxu0
    %v390 = vadd.f32 %v266, %v389
    %v391 = vpop.f32.mrb[0].mxu0
    %392 = vmatprep.mubr.f32.mxu0 0.0
    %393 = vmatmul.mubr.f32.gmra.mrb[0].mxu0 %v293
    %v394 = vpop.f32.mrb[0].mxu0
    %v395 = vadd.f32 %v271, %v394
    %v396 = vpop.f32.mrb[0].mxu0
    %397 = vdwg.mxu0
    %v398 = vld [vmem:[%s4] sm:$0x1]
    %v400 = vlaneseq
    %v401 = vshrl.u32 %v400, 7
    %v402 = vsub.s32 0, %v401
    %v403 = vrot.slane %v398, %v402
    %v405 = vadd.f32 %v365, %v403
    %v406 = vadd.f32 %v370, %v403
    %v407 = vadd.f32 %v375, %v403
    %v408 = vadd.f32 %v380, %v403
    %v409 = vadd.f32 %v385, %v403
    %v410 = vadd.f32 %v390, %v403
    %v411 = vadd.f32 %v395, %v403
    %412 = vst [vmem:[#allocation2] sm:$0xff] %v405
    %413 = vst [vmem:[#allocation2 + $0x8] sm:$0xff] %v406
    %414 = vst [vmem:[#allocation2 + $0x10] sm:$0xff] %v407
    %415 = vst [vmem:[#allocation2 + $0x18] sm:$0xff] %v408
    %416 = vst [vmem:[#allocation2 + $0x20] sm:$0xff] %v409
    %417 = vst [vmem:[#allocation2 + $0x28] sm:$0xff] %v410
    %418 = vst [vmem:[#allocation2 + $0x30] sm:$0xff] %v411
    %vm419 = vcmask 261120
    %420 = vst.msk [vmem:[#allocation3] sm:$0xff] %vm419, 0.0
    %421 = vst.msk [vmem:[#allocation4] sm:$0xff] %vm419, 0.0
    %v422 = vld [vmem:[#allocation13] sm:$0xff]
    %v423 = vld [vmem:[#allocation13 + $0x8] sm:$0xff]
    %v424 = vld [vmem:[#allocation13 + $0x10] sm:$0xff]
    %v425 = vld [vmem:[#allocation13 + $0x18] sm:$0xff]
    %v426 = vld [vmem:[#allocation2] sm:$0xff]
    %v427 = vld [vmem:[#allocation3] sm:$0xff]
    %v428 = vld [vmem:[#allocation4] sm:$0xff]
    %v430 = vsel %vm419, %v427, 0
    %432 = vmatprep.subr.mxu0 0.0
    %433 = vmatpush1.msra.mxu0 %v422
    %434 = vmatprep.subr.mxu0 0.0
    %435 = vmatpush1.msra.mxu0 %v423
    %436 = vmatprep.subr.mxu0 0.0
    %437 = vmatpush1.msra.mxu0 %v424
    %438 = vmatprep.subr.mxu0 0.0
    %439 = vmatpush1.msra.mxu0 %v425
    %440 = vmatprep.subr.mxu0 0.0
    %441 = vmatpush1.msra.mxu0 0.0
    %442 = vmatprep.subr.mxu0 0.0
    %443 = vmatpush1.msra.mxu0 0.0
    %444 = vmatprep.subr.mxu0 0.0
    %445 = vmatpush1.msra.mxu0 0.0
    %446 = vmatprep.subr.mxu0 0.0
    %447 = vmatpush1.msra.mxu0 0.0
    %448 = vmatprep.subr.mxu0 0.0
    %449 = vmatpush1.msra.mxu0 0.0
    %450 = vmatprep.subr.mxu0 0.0
    %451 = vmatpush1.msra.mxu0 0.0
    %452 = vmatprep.subr.mxu0 0.0
    %453 = vmatpush1.msra.mxu0 0.0
    %454 = vmatprep.subr.mxu0 0.0
    %455 = vmatpush1.msra.mxu0 0.0
    %456 = vmatprep.subr.mxu0 0.0
    %457 = vmatpush1.msra.mxu0 0.0
    %458 = vmatprep.subr.mxu0 0.0
    %459 = vmatpush1.msra.mxu0 0.0
    %460 = vmatprep.subr.mxu0 0.0
    %461 = vmatpush1.msra.mxu0 0.0
    %462 = vmatprep.subr.mxu0 0.0
    %463 = vmatpush1.msra.mxu0 0.0
    %464 = vmatprep.subr.mxu0 0.0
    %465 = vmatpush1.msra.mxu0 0.0
    %466 = vmatprep.subr.mxu0 0.0
    %467 = vmatpush1.msra.mxu0 0.0
    %468 = vmatprep.subr.mxu0 0.0
    %469 = vmatpush1.msra.mxu0 0.0
    %470 = vmatprep.subr.mxu0 0.0
    %471 = vmatpush1.msra.mxu0 0.0
    %472 = vmatprep.subr.mxu0 0.0
    %473 = vmatpush1.msra.mxu0 0.0
    %474 = vmatprep.subr.mxu0 0.0
    %475 = vmatpush1.msra.mxu0 0.0
    %476 = vmatprep.subr.mxu0 0.0
    %477 = vmatpush1.msra.mxu0 0.0
    %478 = vmatprep.subr.mxu0 0.0
    %479 = vmatpush1.msra.mxu0 0.0
    %480 = vmatprep.subr.mxu0 0.0
    %481 = vmatpush1.msra.mxu0 0.0
    %482 = vmatprep.subr.mxu0 0.0
    %483 = vmatpush1.msra.mxu0 0.0
    %484 = vmatprep.subr.mxu0 0.0
    %485 = vmatpush1.msra.mxu0 0.0
    %486 = vmatprep.subr.mxu0 0.0
    %487 = vmatpush1.msra.mxu0 0.0
    %488 = vmatprep.subr.mxu0 0.0
    %489 = vmatpush1.msra.mxu0 0.0
    %490 = vmatprep.subr.mxu0 0.0
    %491 = vmatpush1.msra.mxu0 0.0
    %492 = vmatprep.subr.mxu0 0.0
    %493 = vmatpush1.msra.mxu0 0.0
    %494 = vmatprep.subr.mxu0 0.0
    %495 = vmatpush1.msra.mxu0 0.0
    %496 = vmatprep.mubr.f32.mxu0 0.0
    %497 = vmatmul.mubr.f32.gmra.mrb[0].mxu0 %v430
    %v498 = vpop.f32.mrb[0].mxu0
    %v499 = vadd.f32 0.0, %v498
    %v500 = vpop.f32.mrb[0].mxu0
    %501 = vdwg.mxu0
    %v502 = vadd.f32 %v426, %v499
    %v503 = vxor.u32 %v502, 2147483648
    %v504 = vmul.f32 %v503, 1.442695
    %v505 = vpow.pop %v504
    %v506 = vadd.f32 %v505, 1.0
    %v507 = vrcp.pop %v506
    %v508 = vmul.f32 1.0, %v507
    %v509 = vtanh.pop %v502
    %511 = vrot.lane.b32.xlu0 %v428, 32
    %v512 = vpop.permute.xlu0 %511
    %v514 = vmul.f32 %v508, %v512
    %516 = vrot.lane.b32.xlu0 %v509, 32
    %v517 = vpop.permute.xlu0 %516
    %v519 = vmul.f32 %v508, %v517
    %521 = vrot.lane.b32.xlu0 %v519, 32
    %v522 = vpop.permute.xlu0 %521
    %v524 = vadd.f32 %v514, %v522
    %v525 = vtanh.pop %v524
    %527 = vrot.lane.b32.xlu0 %v525, 32
    %v528 = vpop.permute.xlu0 %527
    %v530 = vmul.f32 %v508, %v528
    %532 = vrot.lane.b32.xlu0 %v524, 96
    %v533 = vpop.permute.xlu0 %532
    %535 = vst.msk [vmem:[#allocation4] sm:$0xff] %vm419, %v533
    %537 = vrot.lane.b32.xlu0 %v530, 64
    %v538 = vpop.permute.xlu0 %537
    %540 = vst.msk [vmem:[#allocation3] sm:$0xff] %vm419, %v538
    %s541 = scalar_lea.vmem [#allocation2], 8
    %v542 = vld [vmem:[%s541] sm:$0xff]
    %v543 = vld [vmem:[#allocation3] sm:$0xff]
    %v544 = vld [vmem:[#allocation4] sm:$0xff]
    %v546 = vsel %vm419, %v543, 0
    %548 = vmatprep.subr.mxu0 0.0
    %549 = vmatpush1.msra.mxu0 %v422
    %550 = vmatprep.subr.mxu0 0.0
    %551 = vmatpush1.msra.mxu0 %v423
    %552 = vmatprep.subr.mxu0 0.0
    %553 = vmatpush1.msra.mxu0 %v424
    %554 = vmatprep.subr.mxu0 0.0
    %555 = vmatpush1.msra.mxu0 %v425
    %556 = vmatprep.subr.mxu0 0.0
    %557 = vmatpush1.msra.mxu0 0.0
    %558 = vmatprep.subr.mxu0 0.0
    %559 = vmatpush1.msra.mxu0 0.0
    %560 = vmatprep.subr.mxu0 0.0
    %561 = vmatpush1.msra.mxu0 0.0
    %562 = vmatprep.subr.mxu0 0.0
    %563 = vmatpush1.msra.mxu0 0.0
    %564 = vmatprep.subr.mxu0 0.0
    %565 = vmatpush1.msra.mxu0 0.0
    %566 = vmatprep.subr.mxu0 0.0
    %567 = vmatpush1.msra.mxu0 0.0
    %568 = vmatprep.subr.mxu0 0.0
    %569 = vmatpush1.msra.mxu0 0.0
    %570 = vmatprep.subr.mxu0 0.0
    %571 = vmatpush1.msra.mxu0 0.0
    %572 = vmatprep.subr.mxu0 0.0
    %573 = vmatpush1.msra.mxu0 0.0
    %574 = vmatprep.subr.mxu0 0.0
    %575 = vmatpush1.msra.mxu0 0.0
    %576 = vmatprep.subr.mxu0 0.0
    %577 = vmatpush1.msra.mxu0 0.0
    %578 = vmatprep.subr.mxu0 0.0
    %579 = vmatpush1.msra.mxu0 0.0
    %580 = vmatprep.subr.mxu0 0.0
    %581 = vmatpush1.msra.mxu0 0.0
    %582 = vmatprep.subr.mxu0 0.0
    %583 = vmatpush1.msra.mxu0 0.0
    %584 = vmatprep.subr.mxu0 0.0
    %585 = vmatpush1.msra.mxu0 0.0
    %586 = vmatprep.subr.mxu0 0.0
    %587 = vmatpush1.msra.mxu0 0.0
    %588 = vmatprep.subr.mxu0 0.0
    %589 = vmatpush1.msra.mxu0 0.0
    %590 = vmatprep.subr.mxu0 0.0
    %591 = vmatpush1.msra.mxu0 0.0
    %592 = vmatprep.subr.mxu0 0.0
    %593 = vmatpush1.msra.mxu0 0.0
    %594 = vmatprep.subr.mxu0 0.0
    %595 = vmatpush1.msra.mxu0 0.0
    %596 = vmatprep.subr.mxu0 0.0
    %597 = vmatpush1.msra.mxu0 0.0
    %598 = vmatprep.subr.mxu0 0.0
    %599 = vmatpush1.msra.mxu0 0.0
    %600 = vmatprep.subr.mxu0 0.0
    %601 = vmatpush1.msra.mxu0 0.0
    %602 = vmatprep.subr.mxu0 0.0
    %603 = vmatpush1.msra.mxu0 0.0
    %604 = vmatprep.subr.mxu0 0.0
    %605 = vmatpush1.msra.mxu0 0.0
    %606 = vmatprep.subr.mxu0 0.0
    %607 = vmatpush1.msra.mxu0 0.0
    %608 = vmatprep.subr.mxu0 0.0
    %609 = vmatpush1.msra.mxu0 0.0
    %610 = vmatprep.subr.mxu0 0.0
    %611 = vmatpush1.msra.mxu0 0.0
    %612 = vmatprep.mubr.f32.mxu0 0.0
    %613 = vmatmul.mubr.f32.gmra.mrb[0].mxu0 %v546
    %v614 = vpop.f32.mrb[0].mxu0
    %v615 = vadd.f32 0.0, %v614
    %v616 = vpop.f32.mrb[0].mxu0
    %617 = vdwg.mxu0
    %v618 = vadd.f32 %v542, %v615
    %v619 = vxor.u32 %v618, 2147483648
    %v620 = vmul.f32 %v619, 1.442695
    %v621 = vpow.pop %v620
    %v622 = vadd.f32 %v621, 1.0
    %v623 = vrcp.pop %v622
    %v624 = vmul.f32 1.0, %v623
    %v625 = vtanh.pop %v618
    %627 = vrot.lane.b32.xlu0 %v544, 32
    %v628 = vpop.permute.xlu0 %627
    %v630 = vmul.f32 %v624, %v628
    %632 = vrot.lane.b32.xlu0 %v625, 32
    %v633 = vpop.permute.xlu0 %632
    %v635 = vmul.f32 %v624, %v633
    %637 = vrot.lane.b32.xlu0 %v635, 32
    %v638 = vpop.permute.xlu0 %637
    %v640 = vadd.f32 %v630, %v638
    %v641 = vtanh.pop %v640
    %643 = vrot.lane.b32.xlu0 %v641, 32
    %v644 = vpop.permute.xlu0 %643
    %v646 = vmul.f32 %v624, %v644
    %648 = vrot.lane.b32.xlu0 %v640, 96
    %v649 = vpop.permute.xlu0 %648
    %651 = vst.msk [vmem:[#allocation4] sm:$0xff] %vm419, %v649
    %653 = vrot.lane.b32.xlu0 %v646, 64
    %v654 = vpop.permute.xlu0 %653
    %656 = vst.msk [vmem:[#allocation3] sm:$0xff] %vm419, %v654
    %s657 = scalar_lea.vmem [#allocation2], 16
    %v658 = vld [vmem:[%s657] sm:$0xff]
    %v659 = vld [vmem:[#allocation3] sm:$0xff]
    %v660 = vld [vmem:[#allocation4] sm:$0xff]
    %v662 = vsel %vm419, %v659, 0
    %664 = vmatprep.subr.mxu0 0.0
    %665 = vmatpush1.msra.mxu0 %v422
    %666 = vmatprep.subr.mxu0 0.0
    %667 = vmatpush1.msra.mxu0 %v423
    %668 = vmatprep.subr.mxu0 0.0
    %669 = vmatpush1.msra.mxu0 %v424
    %670 = vmatprep.subr.mxu0 0.0
    %671 = vmatpush1.msra.mxu0 %v425
    %672 = vmatprep.subr.mxu0 0.0
    %673 = vmatpush1.msra.mxu0 0.0
    %674 = vmatprep.subr.mxu0 0.0
    %675 = vmatpush1.msra.mxu0 0.0
    %676 = vmatprep.subr.mxu0 0.0
    %677 = vmatpush1.msra.mxu0 0.0
    %678 = vmatprep.subr.mxu0 0.0
    %679 = vmatpush1.msra.mxu0 0.0
    %680 = vmatprep.subr.mxu0 0.0
    %681 = vmatpush1.msra.mxu0 0.0
    %682 = vmatprep.subr.mxu0 0.0
    %683 = vmatpush1.msra.mxu0 0.0
    %684 = vmatprep.subr.mxu0 0.0
    %685 = vmatpush1.msra.mxu0 0.0
    %686 = vmatprep.subr.mxu0 0.0
    %687 = vmatpush1.msra.mxu0 0.0
    %688 = vmatprep.subr.mxu0 0.0
    %689 = vmatpush1.msra.mxu0 0.0
    %690 = vmatprep.subr.mxu0 0.0
    %691 = vmatpush1.msra.mxu0 0.0
    %692 = vmatprep.subr.mxu0 0.0
    %693 = vmatpush1.msra.mxu0 0.0
    %694 = vmatprep.subr.mxu0 0.0
    %695 = vmatpush1.msra.mxu0 0.0
    %696 = vmatprep.subr.mxu0 0.0
    %697 = vmatpush1.msra.mxu0 0.0
    %698 = vmatprep.subr.mxu0 0.0
    %699 = vmatpush1.msra.mxu0 0.0
    %700 = vmatprep.subr.mxu0 0.0
    %701 = vmatpush1.msra.mxu0 0.0
    %702 = vmatprep.subr.mxu0 0.0
    %703 = vmatpush1.msra.mxu0 0.0
    %704 = vmatprep.subr.mxu0 0.0
    %705 = vmatpush1.msra.mxu0 0.0
    %706 = vmatprep.subr.mxu0 0.0
    %707 = vmatpush1.msra.mxu0 0.0
    %708 = vmatprep.subr.mxu0 0.0
    %709 = vmatpush1.msra.mxu0 0.0
    %710 = vmatprep.subr.mxu0 0.0
    %711 = vmatpush1.msra.mxu0 0.0
    %712 = vmatprep.subr.mxu0 0.0
    %713 = vmatpush1.msra.mxu0 0.0
    %714 = vmatprep.subr.mxu0 0.0
    %715 = vmatpush1.msra.mxu0 0.0
    %716 = vmatprep.subr.mxu0 0.0
    %717 = vmatpush1.msra.mxu0 0.0
    %718 = vmatprep.subr.mxu0 0.0
    %719 = vmatpush1.msra.mxu0 0.0
    %720 = vmatprep.subr.mxu0 0.0
    %721 = vmatpush1.msra.mxu0 0.0
    %722 = vmatprep.subr.mxu0 0.0
    %723 = vmatpush1.msra.mxu0 0.0
    %724 = vmatprep.subr.mxu0 0.0
    %725 = vmatpush1.msra.mxu0 0.0
    %726 = vmatprep.subr.mxu0 0.0
    %727 = vmatpush1.msra.mxu0 0.0
    %728 = vmatprep.mubr.f32.mxu0 0.0
    %729 = vmatmul.mubr.f32.gmra.mrb[0].mxu0 %v662
    %v730 = vpop.f32.mrb[0].mxu0
    %v731 = vadd.f32 0.0, %v730
    %v732 = vpop.f32.mrb[0].mxu0
    %733 = vdwg.mxu0
    %v734 = vadd.f32 %v658, %v731
    %v735 = vxor.u32 %v734, 2147483648
    %v736 = vmul.f32 %v735, 1.442695
    %v737 = vpow.pop %v736
    %v738 = vadd.f32 %v737, 1.0
    %v739 = vrcp.pop %v738
    %v740 = vmul.f32 1.0, %v739
    %v741 = vtanh.pop %v734
    %743 = vrot.lane.b32.xlu0 %v660, 32
    %v744 = vpop.permute.xlu0 %743
    %v746 = vmul.f32 %v740, %v744
    %748 = vrot.lane.b32.xlu0 %v741, 32
    %v749 = vpop.permute.xlu0 %748
    %v751 = vmul.f32 %v740, %v749
    %753 = vrot.lane.b32.xlu0 %v751, 32
    %v754 = vpop.permute.xlu0 %753
    %v756 = vadd.f32 %v746, %v754
    %v757 = vtanh.pop %v756
    %759 = vrot.lane.b32.xlu0 %v757, 32
    %v760 = vpop.permute.xlu0 %759
    %v762 = vmul.f32 %v740, %v760
    %764 = vrot.lane.b32.xlu0 %v756, 96
    %v765 = vpop.permute.xlu0 %764
    %767 = vst.msk [vmem:[#allocation4] sm:$0xff] %vm419, %v765
    %769 = vrot.lane.b32.xlu0 %v762, 64
    %v770 = vpop.permute.xlu0 %769
    %772 = vst.msk [vmem:[#allocation3] sm:$0xff] %vm419, %v770
    %s773 = scalar_lea.vmem [#allocation2], 24
    %v774 = vld [vmem:[%s773] sm:$0xff]
    %v775 = vld [vmem:[#allocation3] sm:$0xff]
    %v776 = vld [vmem:[#allocation4] sm:$0xff]
    %v778 = vsel %vm419, %v775, 0
    %780 = vmatprep.subr.mxu0 0.0
    %781 = vmatpush1.msra.mxu0 %v422
    %782 = vmatprep.subr.mxu0 0.0
    %783 = vmatpush1.msra.mxu0 %v423
    %784 = vmatprep.subr.mxu0 0.0
    %785 = vmatpush1.msra.mxu0 %v424
    %786 = vmatprep.subr.mxu0 0.0
    %787 = vmatpush1.msra.mxu0 %v425
    %788 = vmatprep.subr.mxu0 0.0
    %789 = vmatpush1.msra.mxu0 0.0
    %790 = vmatprep.subr.mxu0 0.0
    %791 = vmatpush1.msra.mxu0 0.0
    %792 = vmatprep.subr.mxu0 0.0
    %793 = vmatpush1.msra.mxu0 0.0
    %794 = vmatprep.subr.mxu0 0.0
    %795 = vmatpush1.msra.mxu0 0.0
    %796 = vmatprep.subr.mxu0 0.0
    %797 = vmatpush1.msra.mxu0 0.0
    %798 = vmatprep.subr.mxu0 0.0
    %799 = vmatpush1.msra.mxu0 0.0
    %800 = vmatprep.subr.mxu0 0.0
    %801 = vmatpush1.msra.mxu0 0.0
    %802 = vmatprep.subr.mxu0 0.0
    %803 = vmatpush1.msra.mxu0 0.0
    %804 = vmatprep.subr.mxu0 0.0
    %805 = vmatpush1.msra.mxu0 0.0
    %806 = vmatprep.subr.mxu0 0.0
    %807 = vmatpush1.msra.mxu0 0.0
    %808 = vmatprep.subr.mxu0 0.0
    %809 = vmatpush1.msra.mxu0 0.0
    %810 = vmatprep.subr.mxu0 0.0
    %811 = vmatpush1.msra.mxu0 0.0
    %812 = vmatprep.subr.mxu0 0.0
    %813 = vmatpush1.msra.mxu0 0.0
    %814 = vmatprep.subr.mxu0 0.0
    %815 = vmatpush1.msra.mxu0 0.0
    %816 = vmatprep.subr.mxu0 0.0
    %817 = vmatpush1.msra.mxu0 0.0
    %818 = vmatprep.subr.mxu0 0.0
    %819 = vmatpush1.msra.mxu0 0.0
    %820 = vmatprep.subr.mxu0 0.0
    %821 = vmatpush1.msra.mxu0 0.0
    %822 = vmatprep.subr.mxu0 0.0
    %823 = vmatpush1.msra.mxu0 0.0
    %824 = vmatprep.subr.mxu0 0.0
    %825 = vmatpush1.msra.mxu0 0.0
    %826 = vmatprep.subr.mxu0 0.0
    %827 = vmatpush1.msra.mxu0 0.0
    %828 = vmatprep.subr.mxu0 0.0
    %829 = vmatpush1.msra.mxu0 0.0
    %830 = vmatprep.subr.mxu0 0.0
    %831 = vmatpush1.msra.mxu0 0.0
    %832 = vmatprep.subr.mxu0 0.0
    %833 = vmatpush1.msra.mxu0 0.0
    %834 = vmatprep.subr.mxu0 0.0
    %835 = vmatpush1.msra.mxu0 0.0
    %836 = vmatprep.subr.mxu0 0.0
    %837 = vmatpush1.msra.mxu0 0.0
    %838 = vmatprep.subr.mxu0 0.0
    %839 = vmatpush1.msra.mxu0 0.0
    %840 = vmatprep.subr.mxu0 0.0
    %841 = vmatpush1.msra.mxu0 0.0
    %842 = vmatprep.subr.mxu0 0.0
    %843 = vmatpush1.msra.mxu0 0.0
    %844 = vmatprep.mubr.f32.mxu0 0.0
    %845 = vmatmul.mubr.f32.gmra.mrb[0].mxu0 %v778
    %v846 = vpop.f32.mrb[0].mxu0
    %v847 = vadd.f32 0.0, %v846
    %v848 = vpop.f32.mrb[0].mxu0
    %849 = vdwg.mxu0
    %v850 = vadd.f32 %v774, %v847
    %v851 = vxor.u32 %v850, 2147483648
    %v852 = vmul.f32 %v851, 1.442695
    %v853 = vpow.pop %v852
    %v854 = vadd.f32 %v853, 1.0
    %v855 = vrcp.pop %v854
    %v856 = vmul.f32 1.0, %v855
    %v857 = vtanh.pop %v850
    %859 = vrot.lane.b32.xlu0 %v776, 32
    %v860 = vpop.permute.xlu0 %859
    %v862 = vmul.f32 %v856, %v860
    %864 = vrot.lane.b32.xlu0 %v857, 32
    %v865 = vpop.permute.xlu0 %864
    %v867 = vmul.f32 %v856, %v865
    %869 = vrot.lane.b32.xlu0 %v867, 32
    %v870 = vpop.permute.xlu0 %869
    %v872 = vadd.f32 %v862, %v870
    %v873 = vtanh.pop %v872
    %875 = vrot.lane.b32.xlu0 %v873, 32
    %v876 = vpop.permute.xlu0 %875
    %v878 = vmul.f32 %v856, %v876
    %880 = vrot.lane.b32.xlu0 %v872, 96
    %v881 = vpop.permute.xlu0 %880
    %883 = vst.msk [vmem:[#allocation4] sm:$0xff] %vm419, %v881
    %885 = vrot.lane.b32.xlu0 %v878, 64
    %v886 = vpop.permute.xlu0 %885
    %888 = vst.msk [vmem:[#allocation3] sm:$0xff] %vm419, %v886
    %s889 = scalar_lea.vmem [#allocation2], 32
    %v890 = vld [vmem:[%s889] sm:$0xff]
    %v891 = vld [vmem:[#allocation3] sm:$0xff]
    %v892 = vld [vmem:[#allocation4] sm:$0xff]
    %v894 = vsel %vm419, %v891, 0
    %896 = vmatprep.subr.mxu0 0.0
    %897 = vmatpush1.msra.mxu0 %v422
    %898 = vmatprep.subr.mxu0 0.0
    %899 = vmatpush1.msra.mxu0 %v423
    %900 = vmatprep.subr.mxu0 0.0
    %901 = vmatpush1.msra.mxu0 %v424
    %902 = vmatprep.subr.mxu0 0.0
    %903 = vmatpush1.msra.mxu0 %v425
    %904 = vmatprep.subr.mxu0 0.0
    %905 = vmatpush1.msra.mxu0 0.0
    %906 = vmatprep.subr.mxu0 0.0
    %907 = vmatpush1.msra.mxu0 0.0
    %908 = vmatprep.subr.mxu0 0.0
    %909 = vmatpush1.msra.mxu0 0.0
    %910 = vmatprep.subr.mxu0 0.0
    %911 = vmatpush1.msra.mxu0 0.0
    %912 = vmatprep.subr.mxu0 0.0
    %913 = vmatpush1.msra.mxu0 0.0
    %914 = vmatprep.subr.mxu0 0.0
    %915 = vmatpush1.msra.mxu0 0.0
    %916 = vmatprep.subr.mxu0 0.0
    %917 = vmatpush1.msra.mxu0 0.0
    %918 = vmatprep.subr.mxu0 0.0
    %919 = vmatpush1.msra.mxu0 0.0
    %920 = vmatprep.subr.mxu0 0.0
    %921 = vmatpush1.msra.mxu0 0.0
    %922 = vmatprep.subr.mxu0 0.0
    %923 = vmatpush1.msra.mxu0 0.0
    %924 = vmatprep.subr.mxu0 0.0
    %925 = vmatpush1.msra.mxu0 0.0
    %926 = vmatprep.subr.mxu0 0.0
    %927 = vmatpush1.msra.mxu0 0.0
    %928 = vmatprep.subr.mxu0 0.0
    %929 = vmatpush1.msra.mxu0 0.0
    %930 = vmatprep.subr.mxu0 0.0
    %931 = vmatpush1.msra.mxu0 0.0
    %932 = vmatprep.subr.mxu0 0.0
    %933 = vmatpush1.msra.mxu0 0.0
    %934 = vmatprep.subr.mxu0 0.0
    %935 = vmatpush1.msra.mxu0 0.0
    %936 = vmatprep.subr.mxu0 0.0
    %937 = vmatpush1.msra.mxu0 0.0
    %938 = vmatprep.subr.mxu0 0.0
    %939 = vmatpush1.msra.mxu0 0.0
    %940 = vmatprep.subr.mxu0 0.0
    %941 = vmatpush1.msra.mxu0 0.0
    %942 = vmatprep.subr.mxu0 0.0
    %943 = vmatpush1.msra.mxu0 0.0
    %944 = vmatprep.subr.mxu0 0.0
    %945 = vmatpush1.msra.mxu0 0.0
    %946 = vmatprep.subr.mxu0 0.0
    %947 = vmatpush1.msra.mxu0 0.0
    %948 = vmatprep.subr.mxu0 0.0
    %949 = vmatpush1.msra.mxu0 0.0
    %950 = vmatprep.subr.mxu0 0.0
    %951 = vmatpush1.msra.mxu0 0.0
    %952 = vmatprep.subr.mxu0 0.0
    %953 = vmatpush1.msra.mxu0 0.0
    %954 = vmatprep.subr.mxu0 0.0
    %955 = vmatpush1.msra.mxu0 0.0
    %956 = vmatprep.subr.mxu0 0.0
    %957 = vmatpush1.msra.mxu0 0.0
    %958 = vmatprep.subr.mxu0 0.0
    %959 = vmatpush1.msra.mxu0 0.0
    %960 = vmatprep.mubr.f32.mxu0 0.0
    %961 = vmatmul.mubr.f32.gmra.mrb[0].mxu0 %v894
    %v962 = vpop.f32.mrb[0].mxu0
    %v963 = vadd.f32 0.0, %v962
    %v964 = vpop.f32.mrb[0].mxu0
    %965 = vdwg.mxu0
    %v966 = vadd.f32 %v890, %v963
    %v967 = vxor.u32 %v966, 2147483648
    %v968 = vmul.f32 %v967, 1.442695
    %v969 = vpow.pop %v968
    %v970 = vadd.f32 %v969, 1.0
    %v971 = vrcp.pop %v970
    %v972 = vmul.f32 1.0, %v971
    %v973 = vtanh.pop %v966
    %975 = vrot.lane.b32.xlu0 %v892, 32
    %v976 = vpop.permute.xlu0 %975
    %v978 = vmul.f32 %v972, %v976
    %980 = vrot.lane.b32.xlu0 %v973, 32
    %v981 = vpop.permute.xlu0 %980
    %v983 = vmul.f32 %v972, %v981
    %985 = vrot.lane.b32.xlu0 %v983, 32
    %v986 = vpop.permute.xlu0 %985
    %v988 = vadd.f32 %v978, %v986
    %v989 = vtanh.pop %v988
    %991 = vrot.lane.b32.xlu0 %v989, 32
    %v992 = vpop.permute.xlu0 %991
    %v994 = vmul.f32 %v972, %v992
    %996 = vrot.lane.b32.xlu0 %v988, 96
    %v997 = vpop.permute.xlu0 %996
    %999 = vst.msk [vmem:[#allocation4] sm:$0xff] %vm419, %v997
    %1001 = vrot.lane.b32.xlu0 %v994, 64
    %v1002 = vpop.permute.xlu0 %1001
    %1004 = vst.msk [vmem:[#allocation3] sm:$0xff] %vm419, %v1002
    %s1005 = scalar_lea.vmem [#allocation2], 40
    %v1006 = vld [vmem:[%s1005] sm:$0xff]
    %v1007 = vld [vmem:[#allocation3] sm:$0xff]
    %v1008 = vld [vmem:[#allocation4] sm:$0xff]
    %v1010 = vsel %vm419, %v1007, 0
    %1012 = vmatprep.subr.mxu0 0.0
    %1013 = vmatpush1.msra.mxu0 %v422
    %1014 = vmatprep.subr.mxu0 0.0
    %1015 = vmatpush1.msra.mxu0 %v423
    %1016 = vmatprep.subr.mxu0 0.0
    %1017 = vmatpush1.msra.mxu0 %v424
    %1018 = vmatprep.subr.mxu0 0.0
    %1019 = vmatpush1.msra.mxu0 %v425
    %1020 = vmatprep.subr.mxu0 0.0
    %1021 = vmatpush1.msra.mxu0 0.0
    %1022 = vmatprep.subr.mxu0 0.0
    %1023 = vmatpush1.msra.mxu0 0.0
    %1024 = vmatprep.subr.mxu0 0.0
    %1025 = vmatpush1.msra.mxu0 0.0
    %1026 = vmatprep.subr.mxu0 0.0
    %1027 = vmatpush1.msra.mxu0 0.0
    %1028 = vmatprep.subr.mxu0 0.0
    %1029 = vmatpush1.msra.mxu0 0.0
    %1030 = vmatprep.subr.mxu0 0.0
    %1031 = vmatpush1.msra.mxu0 0.0
    %1032 = vmatprep.subr.mxu0 0.0
    %1033 = vmatpush1.msra.mxu0 0.0
    %1034 = vmatprep.subr.mxu0 0.0
    %1035 = vmatpush1.msra.mxu0 0.0
    %1036 = vmatprep.subr.mxu0 0.0
    %1037 = vmatpush1.msra.mxu0 0.0
    %1038 = vmatprep.subr.mxu0 0.0
    %1039 = vmatpush1.msra.mxu0 0.0
    %1040 = vmatprep.subr.mxu0 0.0
    %1041 = vmatpush1.msra.mxu0 0.0
    %1042 = vmatprep.subr.mxu0 0.0
    %1043 = vmatpush1.msra.mxu0 0.0
    %1044 = vmatprep.subr.mxu0 0.0
    %1045 = vmatpush1.msra.mxu0 0.0
    %1046 = vmatprep.subr.mxu0 0.0
    %1047 = vmatpush1.msra.mxu0 0.0
    %1048 = vmatprep.subr.mxu0 0.0
    %1049 = vmatpush1.msra.mxu0 0.0
    %1050 = vmatprep.subr.mxu0 0.0
    %1051 = vmatpush1.msra.mxu0 0.0
    %1052 = vmatprep.subr.mxu0 0.0
    %1053 = vmatpush1.msra.mxu0 0.0
    %1054 = vmatprep.subr.mxu0 0.0
    %1055 = vmatpush1.msra.mxu0 0.0
    %1056 = vmatprep.subr.mxu0 0.0
    %1057 = vmatpush1.msra.mxu0 0.0
    %1058 = vmatprep.subr.mxu0 0.0
    %1059 = vmatpush1.msra.mxu0 0.0
    %1060 = vmatprep.subr.mxu0 0.0
    %1061 = vmatpush1.msra.mxu0 0.0
    %1062 = vmatprep.subr.mxu0 0.0
    %1063 = vmatpush1.msra.mxu0 0.0
    %1064 = vmatprep.subr.mxu0 0.0
    %1065 = vmatpush1.msra.mxu0 0.0
    %1066 = vmatprep.subr.mxu0 0.0
    %1067 = vmatpush1.msra.mxu0 0.0
    %1068 = vmatprep.subr.mxu0 0.0
    %1069 = vmatpush1.msra.mxu0 0.0
    %1070 = vmatprep.subr.mxu0 0.0
    %1071 = vmatpush1.msra.mxu0 0.0
    %1072 = vmatprep.subr.mxu0 0.0
    %1073 = vmatpush1.msra.mxu0 0.0
    %1074 = vmatprep.subr.mxu0 0.0
    %1075 = vmatpush1.msra.mxu0 0.0
    %1076 = vmatprep.mubr.f32.mxu0 0.0
    %1077 = vmatmul.mubr.f32.gmra.mrb[0].mxu0 %v1010
    %v1078 = vpop.f32.mrb[0].mxu0
    %v1079 = vadd.f32 0.0, %v1078
    %v1080 = vpop.f32.mrb[0].mxu0
    %1081 = vdwg.mxu0
    %v1082 = vadd.f32 %v1006, %v1079
    %v1083 = vxor.u32 %v1082, 2147483648
    %v1084 = vmul.f32 %v1083, 1.442695
    %v1085 = vpow.pop %v1084
    %v1086 = vadd.f32 %v1085, 1.0
    %v1087 = vrcp.pop %v1086
    %v1088 = vmul.f32 1.0, %v1087
    %v1089 = vtanh.pop %v1082
    %1091 = vrot.lane.b32.xlu0 %v1008, 32
    %v1092 = vpop.permute.xlu0 %1091
    %v1094 = vmul.f32 %v1088, %v1092
    %1096 = vrot.lane.b32.xlu0 %v1089, 32
    %v1097 = vpop.permute.xlu0 %1096
    %v1099 = vmul.f32 %v1088, %v1097
    %1101 = vrot.lane.b32.xlu0 %v1099, 32
    %v1102 = vpop.permute.xlu0 %1101
    %v1104 = vadd.f32 %v1094, %v1102
    %v1105 = vtanh.pop %v1104
    %1107 = vrot.lane.b32.xlu0 %v1105, 32
    %v1108 = vpop.permute.xlu0 %1107
    %v1110 = vmul.f32 %v1088, %v1108
    %1112 = vrot.lane.b32.xlu0 %v1104, 96
    %v1113 = vpop.permute.xlu0 %1112
    %1115 = vst.msk [vmem:[#allocation4] sm:$0xff] %vm419, %v1113
    %1117 = vrot.lane.b32.xlu0 %v1110, 64
    %v1118 = vpop.permute.xlu0 %1117
    %1120 = vst.msk [vmem:[#allocation3] sm:$0xff] %vm419, %v1118
    %s1121 = scalar_lea.vmem [#allocation2], 48
    %v1122 = vld [vmem:[%s1121] sm:$0xff]
    %v1123 = vld [vmem:[#allocation3] sm:$0xff]
    %v1124 = vld [vmem:[#allocation4] sm:$0xff]
    %v1126 = vsel %vm419, %v1123, 0
    %1128 = vmatprep.subr.mxu0 0.0
    %1129 = vmatpush1.msra.mxu0 %v422
    %1130 = vmatprep.subr.mxu0 0.0
    %1131 = vmatpush1.msra.mxu0 %v423
    %1132 = vmatprep.subr.mxu0 0.0
    %1133 = vmatpush1.msra.mxu0 %v424
    %1134 = vmatprep.subr.mxu0 0.0
    %1135 = vmatpush1.msra.mxu0 %v425
    %1136 = vmatprep.subr.mxu0 0.0
    %1137 = vmatpush1.msra.mxu0 0.0
    %1138 = vmatprep.subr.mxu0 0.0
    %1139 = vmatpush1.msra.mxu0 0.0
    %1140 = vmatprep.subr.mxu0 0.0
    %1141 = vmatpush1.msra.mxu0 0.0
    %1142 = vmatprep.subr.mxu0 0.0
    %1143 = vmatpush1.msra.mxu0 0.0
    %1144 = vmatprep.subr.mxu0 0.0
    %1145 = vmatpush1.msra.mxu0 0.0
    %1146 = vmatprep.subr.mxu0 0.0
    %1147 = vmatpush1.msra.mxu0 0.0
    %1148 = vmatprep.subr.mxu0 0.0
    %1149 = vmatpush1.msra.mxu0 0.0
    %1150 = vmatprep.subr.mxu0 0.0
    %1151 = vmatpush1.msra.mxu0 0.0
    %1152 = vmatprep.subr.mxu0 0.0
    %1153 = vmatpush1.msra.mxu0 0.0
    %1154 = vmatprep.subr.mxu0 0.0
    %1155 = vmatpush1.msra.mxu0 0.0
    %1156 = vmatprep.subr.mxu0 0.0
    %1157 = vmatpush1.msra.mxu0 0.0
    %1158 = vmatprep.subr.mxu0 0.0
    %1159 = vmatpush1.msra.mxu0 0.0
    %1160 = vmatprep.subr.mxu0 0.0
    %1161 = vmatpush1.msra.mxu0 0.0
    %1162 = vmatprep.subr.mxu0 0.0
    %1163 = vmatpush1.msra.mxu0 0.0
    %1164 = vmatprep.subr.mxu0 0.0
    %1165 = vmatpush1.msra.mxu0 0.0
    %1166 = vmatprep.subr.mxu0 0.0
    %1167 = vmatpush1.msra.mxu0 0.0
    %1168 = vmatprep.subr.mxu0 0.0
    %1169 = vmatpush1.msra.mxu0 0.0
    %1170 = vmatprep.subr.mxu0 0.0
    %1171 = vmatpush1.msra.mxu0 0.0
    %1172 = vmatprep.subr.mxu0 0.0
    %1173 = vmatpush1.msra.mxu0 0.0
    %1174 = vmatprep.subr.mxu0 0.0
    %1175 = vmatpush1.msra.mxu0 0.0
    %1176 = vmatprep.subr.mxu0 0.0
    %1177 = vmatpush1.msra.mxu0 0.0
    %1178 = vmatprep.subr.mxu0 0.0
    %1179 = vmatpush1.msra.mxu0 0.0
    %1180 = vmatprep.subr.mxu0 0.0
    %1181 = vmatpush1.msra.mxu0 0.0
    %1182 = vmatprep.subr.mxu0 0.0
    %1183 = vmatpush1.msra.mxu0 0.0
    %1184 = vmatprep.subr.mxu0 0.0
    %1185 = vmatpush1.msra.mxu0 0.0
    %1186 = vmatprep.subr.mxu0 0.0
    %1187 = vmatpush1.msra.mxu0 0.0
    %1188 = vmatprep.subr.mxu0 0.0
    %1189 = vmatpush1.msra.mxu0 0.0
    %1190 = vmatprep.subr.mxu0 0.0
    %1191 = vmatpush1.msra.mxu0 0.0
    %1192 = vmatprep.mubr.f32.mxu0 0.0
    %1193 = vmatmul.mubr.f32.gmra.mrb[0].mxu0 %v1126
    %v1194 = vpop.f32.mrb[0].mxu0
    %v1195 = vadd.f32 0.0, %v1194
    %v1196 = vpop.f32.mrb[0].mxu0
    %1197 = vdwg.mxu0
    %v1198 = vadd.f32 %v1122, %v1195
    %v1199 = vxor.u32 %v1198, 2147483648
    %v1200 = vmul.f32 %v1199, 1.442695
    %v1201 = vpow.pop %v1200
    %v1202 = vadd.f32 %v1201, 1.0
    %v1203 = vrcp.pop %v1202
    %v1204 = vmul.f32 1.0, %v1203
    %v1205 = vtanh.pop %v1198
    %1207 = vrot.lane.b32.xlu0 %v1124, 32
    %v1208 = vpop.permute.xlu0 %1207
    %v1210 = vmul.f32 %v1204, %v1208
    %1212 = vrot.lane.b32.xlu0 %v1205, 32
    %v1213 = vpop.permute.xlu0 %1212
    %v1215 = vmul.f32 %v1204, %v1213
    %1217 = vrot.lane.b32.xlu0 %v1215, 32
    %v1218 = vpop.permute.xlu0 %1217
    %v1220 = vadd.f32 %v1210, %v1218
    %v1221 = vtanh.pop %v1220
    %1223 = vrot.lane.b32.xlu0 %v1221, 32
    %v1224 = vpop.permute.xlu0 %1223
    %v1226 = vmul.f32 %v1204, %v1224
    %1228 = vrot.lane.b32.xlu0 %v1220, 96
    %v1229 = vpop.permute.xlu0 %1228
    %1231 = vst.msk [vmem:[#allocation4] sm:$0xff] %vm419, %v1229
    %1233 = vrot.lane.b32.xlu0 %v1226, 64
    %v1234 = vpop.permute.xlu0 %1233
    %1236 = vst.msk [vmem:[#allocation3] sm:$0xff] %vm419, %v1234
    %v1237 = vld [vmem:[#allocation3] sm:$0xff]
    %v1238 = vld [vmem:[#allocation14] sm:$0xff]
    %v1239 = vld [vmem:[#allocation14 + $0x8] sm:$0xff]
    %v1240 = vld [vmem:[#allocation14 + $0x10] sm:$0xff]
    %v1241 = vld [vmem:[#allocation14 + $0x18] sm:$0xff]
    %v1242 = vld [vmem:[%s7] sm:$0x1]
    %v1244 = vlaneseq
    %v1245 = vshrl.u32 %v1244, 7
    %v1246 = vsub.s32 0, %v1245
    %v1247 = vrot.slane %v1242, %v1246
    %v1250 = vsel %vm419, %v1237, 0
    %1252 = vmatprep.subr.mxu0 0.0
    %1253 = vmatpush1.msra.mxu0 %v1238
    %1254 = vmatprep.subr.mxu0 0.0
    %1255 = vmatpush1.msra.mxu0 %v1239
    %1256 = vmatprep.subr.mxu0 0.0
    %1257 = vmatpush1.msra.mxu0 %v1240
    %1258 = vmatprep.subr.mxu0 0.0
    %1259 = vmatpush1.msra.mxu0 %v1241
    %1260 = vmatprep.subr.mxu0 0.0
    %1261 = vmatpush1.msra.mxu0 0.0
    %1262 = vmatprep.subr.mxu0 0.0
    %1263 = vmatpush1.msra.mxu0 0.0
    %1264 = vmatprep.subr.mxu0 0.0
    %1265 = vmatpush1.msra.mxu0 0.0
    %1266 = vmatprep.subr.mxu0 0.0
    %1267 = vmatpush1.msra.mxu0 0.0
    %1268 = vmatprep.subr.mxu0 0.0
    %1269 = vmatpush1.msra.mxu0 0.0
    %1270 = vmatprep.subr.mxu0 0.0
    %1271 = vmatpush1.msra.mxu0 0.0
    %1272 = vmatprep.subr.mxu0 0.0
    %1273 = vmatpush1.msra.mxu0 0.0
    %1274 = vmatprep.subr.mxu0 0.0
    %1275 = vmatpush1.msra.mxu0 0.0
    %1276 = vmatprep.subr.mxu0 0.0
    %1277 = vmatpush1.msra.mxu0 0.0
    %1278 = vmatprep.subr.mxu0 0.0
    %1279 = vmatpush1.msra.mxu0 0.0
    %1280 = vmatprep.subr.mxu0 0.0
    %1281 = vmatpush1.msra.mxu0 0.0
    %1282 = vmatprep.subr.mxu0 0.0
    %1283 = vmatpush1.msra.mxu0 0.0
    %1284 = vmatprep.subr.mxu0 0.0
    %1285 = vmatpush1.msra.mxu0 0.0
    %1286 = vmatprep.subr.mxu0 0.0
    %1287 = vmatpush1.msra.mxu0 0.0
    %1288 = vmatprep.subr.mxu0 0.0
    %1289 = vmatpush1.msra.mxu0 0.0
    %1290 = vmatprep.subr.mxu0 0.0
    %1291 = vmatpush1.msra.mxu0 0.0
    %1292 = vmatprep.subr.mxu0 0.0
    %1293 = vmatpush1.msra.mxu0 0.0
    %1294 = vmatprep.subr.mxu0 0.0
    %1295 = vmatpush1.msra.mxu0 0.0
    %1296 = vmatprep.subr.mxu0 0.0
    %1297 = vmatpush1.msra.mxu0 0.0
    %1298 = vmatprep.subr.mxu0 0.0
    %1299 = vmatpush1.msra.mxu0 0.0
    %1300 = vmatprep.subr.mxu0 0.0
    %1301 = vmatpush1.msra.mxu0 0.0
    %1302 = vmatprep.subr.mxu0 0.0
    %1303 = vmatpush1.msra.mxu0 0.0
    %1304 = vmatprep.subr.mxu0 0.0
    %1305 = vmatpush1.msra.mxu0 0.0
    %1306 = vmatprep.subr.mxu0 0.0
    %1307 = vmatpush1.msra.mxu0 0.0
    %1308 = vmatprep.subr.mxu0 0.0
    %1309 = vmatpush1.msra.mxu0 0.0
    %1310 = vmatprep.subr.mxu0 0.0
    %1311 = vmatpush1.msra.mxu0 0.0
    %1312 = vmatprep.subr.mxu0 0.0
    %1313 = vmatpush1.msra.mxu0 0.0
    %1314 = vmatprep.subr.mxu0 0.0
    %1315 = vmatpush1.msra.mxu0 0.0
    %1316 = vmatprep.mubr.f32.mxu0 0.0
    %1317 = vmatmul.mubr.f32.gmra.mrb[0].mxu0 %v1250
    %v1318 = vpop.f32.mrb[0].mxu0
    %v1319 = vadd.f32 %v1247, %v1318
    %v1320 = vpop.f32.mrb[0].mxu0
    %1321 = vdwg.mxu0
    %1322 = vst.msk [vmem:[#allocation16] sm:$0xff] %vm419, %v1319
    // Predicated region
    $region58: #{tpu_custom_call.1} parent=1 // pred_check
      _
    $region59: #{tpu_custom_call.1} parent=1 // pred_check_branch
      %1324 = sbr.rel (0) target = $region61
    $region60: #{tpu_custom_call.1} parent=1 // pred_region
      %s1326 = ssub.s32 128, 128
      %1327 = vsyncadd [#allocation7], %s1326
      %s1329 = sshll.u32 [#allocation16], 4
      %s1330 = int_to_ptr.vmem [resolvable:$true] %s1329
      %1332 = dma.vmem_to_hbm [thread:$0]  %s1330, 128, %s8, [#allocation7]
    $region61: #{tpu_custom_call.1} parent=1 // pred_fallthru
      _
    // Predicated region
    $region62: #{tpu_custom_call.1} parent=1 // pred_check
      _
    $region63: #{tpu_custom_call.1} parent=1 // pred_check_branch
      %1334 = sbr.rel (0) target = $region65
    $region64: #{tpu_custom_call.1} parent=1 // pred_region
      %1335 = dma.done [#allocation7], 128
    $region65: #{tpu_custom_call.1} parent=1 // pred_fallthru
      _
    %1336 = vsyncpa [#allocation6], 1
    %1337 = vsyncpa [#allocation9], 1
    %1338 = vsyncpa [#allocation12], 1
    %1339 = vsyncpa [#allocation15], 1
    %1340 = vsyncpa [#allocation7], 1

</llo_original>
